<compile_context>
chip_gen: v6e
topology: v6e:2x2x1
jax: 0.10.0
libtpu: 0.0.40
codegen_flags: <defaults>
</compile_context>

<pallas_src>
import functools

import jax
import jax.numpy as jnp
from jax.experimental import pallas as pl
from jax.experimental.pallas import tpu as pltpu


OUT_SIZE_2 = 256     # self.out_size_2  (channel dim of dd2 features)
HIDDEN = 1024        # nn1 output
NR_CLASSES = 40      # data_name == 'Geometry' -> 40 classes


def _head_kernel(feat_ref, w1_ref, b1_ref, w2_ref, b2_ref, out_ref, acc_ref,
                 *, inv_p, compute_dtype):
    """sigmoid -> mean over points (streamed, accumulated) -> Linear(256,1024)
       -> ELU -> Linear(1024,40) -> LogSoftmax(dim=1).

       Relies on the P (reduction) axis being grid axis 1 (innermost,
       sequential): acc is zeroed at p==0 and the epilogue/output write happens
       only at p==last.  Do NOT reorder the grid."""
    p = pl.program_id(1)

    @pl.when(p == 0)
    def _():
        acc_ref[...] = jnp.zeros_like(acc_ref)

    # features_dd2 = torch.sigmoid(features_dd2); mean over points.
    # sigmoid(x) = 0.5*tanh(0.5*x) + 0.5 — only the tanh and the sum live in
    # the streamed loop; the affine part + 1/P are applied once in the epilogue.
    f = feat_ref[...].astype(compute_dtype)                   # (tB, tP, C)
    t = jnp.tanh(f * jnp.asarray(0.5, dtype=compute_dtype))
    acc_ref[...] += jnp.sum(t, axis=1, dtype=jnp.float32)     # (tB, C), f32 acc

    @pl.when(p == pl.num_programs(1) - 1)
    def _():
        # ys = mean_p(sigmoid(f)) = 0.5 + 0.5/P * sum_p(tanh(0.5*f))
        ys = 0.5 + (0.5 * inv_p) * acc_ref[...]               # (tB, C) f32

        # y1 = F.elu(self.nn1(ys))
        y1 = jnp.dot(ys, w1_ref[...], preferred_element_type=jnp.float32)
        y1 = y1 + b1_ref[...]                                 # (tB, 1024)
        # ELU(alpha=1); clamp the exp argument so the unselected lane is finite.
        y1 = jnp.where(y1 > 0.0, y1, jnp.exp(jnp.minimum(y1, 0.0)) - 1.0)

        # y2 = self.sm(self.nn2(y1))   (LogSoftmax over the class dim)
        y2 = jnp.dot(y1, w2_ref[...], preferred_element_type=jnp.float32)
        y2 = y2 + b2_ref[...]                                 # (tB, nr_classes)
        m = jnp.max(y2, axis=1, keepdims=True)
        z = y2 - m
        lse = jnp.log(jnp.sum(jnp.exp(z), axis=1, keepdims=True))
        out_ref[...] = (z - lse).astype(out_ref.dtype)


def _pick_tile(n, cap, multiple):
    """Largest divisor of n that is <= cap and a multiple of `multiple`
       (a full-extent block d == n is always legal)."""
    cap = max(1, min(n, cap))
    for d in range(cap, 0, -1):
        if n % d == 0 and (d % multiple == 0 or d == n):
            return d
    return n


def _tpu_generation():
    try:
        kind = jax.devices()[0].device_kind.lower()
    except Exception:
        return "unknown"
    if "v7" in kind:
        return "v7x"
    if "v6" in kind:
        return "v6e"
    if "v5 lite" in kind or "v5lite" in kind or "v5e" in kind:
        return "v5e"
    return "other"


# Per-generation budgets: double-buffered feature footprint target and the
# scoped-VMEM cap passed to the compiler.  bf16_compute => chip has bf16
# VPU/EUP so tanh can stay in bf16 when the input is bf16.
_GEN_CONFIG = {
    "v7x": dict(feat_budget=32 << 20, vmem_cap=48 << 20, bf16_compute=True),
    "v6e": dict(feat_budget=72 << 20, vmem_cap=96 << 20, bf16_compute=True),
    "v5e": dict(feat_budget=64 << 20, vmem_cap=96 << 20, bf16_compute=False),
}
# Conservative default for unknown / older chips (small VMEM, no bf16 VPU).
_GEN_DEFAULT = dict(feat_budget=16 << 20, vmem_cap=24 << 20, bf16_compute=False)


@functools.partial(jax.jit, static_argnames=("tile_b", "tile_p"))
def net_head_pallas(features, w1, b1, w2, b2, *, tile_b=None, tile_p=None):
    """features: (B, P, 256) pre-sigmoid point features (output of dd2), any
       float dtype (streamed as-is — no wrapper-side cast).
       Returns (B, 40) log-probabilities (f32)."""
    B, P, C = features.shape
    assert C == OUT_SIZE_2

    gen = _tpu_generation()
    cfg = _GEN_CONFIG.get(gen, _GEN_DEFAULT)

    # bf16 math only where the VPU/EUP supports it AND the producer already
    # hands us bf16; otherwise upcast to f32 right after load inside the kernel.
    if features.dtype == jnp.bfloat16 and cfg["bf16_compute"]:
        compute_dtype = jnp.bfloat16
    else:
        compute_dtype = jnp.float32

    feat_itemsize = jnp.dtype(features.dtype).itemsize
    p_multiple = 16 if features.dtype == jnp.bfloat16 else 8

    if tile_b is None:
        cap_b = 128                      # big M for the epilogue MXU matmul
        if gen == "v7x":
            # keep >= 2 B tiles so the "parallel" axis shards across both TCs
            cap_b = min(cap_b, max(8, B // 2))
        tile_b = _pick_tile(B, cap_b, 8)
    if tile_p is None:
        per_buf = cfg["feat_budget"] // 2          # double-buffered features
        cap_p = max(p_multiple, per_buf // (tile_b * C * feat_itemsize))
        tile_p = _pick_tile(P, cap_p, p_multiple)
    assert B % tile_b == 0 and P % tile_p == 0

    b1_2d = b1.reshape(1, HIDDEN)
    b2_2d = b2.reshape(1, NR_CLASSES)

    # P (reduction) axis MUST be the innermost / last grid axis.
    grid = (B // tile_b, P // tile_p)

    grid_spec = pltpu.PrefetchScalarGridSpec(
        num_scalar_prefetch=0,
        grid=grid,
        in_specs=[
            # Streamed / double-buffered feature tiles.
            pl.BlockSpec((tile_b, tile_p, C), lambda b, p: (b, p, 0)),
            # Weights & biases: constant block index -> DMA'd once, VMEM-resident.
            pl.BlockSpec((C, HIDDEN), lambda b, p: (0, 0)),
            pl.BlockSpec((1, HIDDEN), lambda b, p: (0, 0)),
            pl.BlockSpec((HIDDEN, NR_CLASSES), lambda b, p: (0, 0)),
            pl.BlockSpec((1, NR_CLASSES), lambda b, p: (0, 0)),
        ],
        out_specs=pl.BlockSpec((tile_b, NR_CLASSES), lambda b, p: (b, 0)),
        scratch_shapes=[pltpu.VMEM((tile_b, C), jnp.float32)],  # pooled-sum acc
    )

    # Scoped VMEM: double-buffered feature tile + (double-buffered) weights +
    # output + accumulator + headroom, capped per generation.
    feat_tile_bytes = tile_b * tile_p * C * feat_itemsize
    weight_bytes = (C * HIDDEN + HIDDEN + HIDDEN * NR_CLASSES + NR_CLASSES) * 4
    vmem_limit = (2 * feat_tile_bytes + 2 * weight_bytes
                  + 2 * tile_b * NR_CLASSES * 4 + tile_b * C * 4 + (8 << 20))
    vmem_limit = int(min(vmem_limit, cfg["vmem_cap"]))

    kernel = functools.partial(_head_kernel, inv_p=1.0 / P,
                               compute_dtype=compute_dtype)

    return pl.pallas_call(
        kernel,
        out_shape=jax.ShapeDtypeStruct((B, NR_CLASSES), jnp.float32),
        grid_spec=grid_spec,
        compiler_params=pltpu.CompilerParams(
            dimension_semantics=("parallel", "arbitrary"),
            vmem_limit_bytes=vmem_limit),
    )(features, w1, b1_2d, w2, b2_2d)


def net_head_reference(features, w1, b1, w2, b2):
    """Pure-JAX reference for the same head (correctness check)."""
    f = jax.nn.sigmoid(features.astype(jnp.float32))
    ys = jnp.mean(f, axis=1)
    y1 = jax.nn.elu(jnp.dot(ys, w1, precision=jax.lax.Precision.HIGHEST) + b1)
    y2 = jnp.dot(y1, w2, precision=jax.lax.Precision.HIGHEST) + b2
    return jax.nn.log_softmax(y2, axis=1)


if __name__ == "__main__":
    key = jax.random.PRNGKey(0)
    k_feat, k_w1, k_b1, k_w2, k_b2 = jax.random.split(key, 5)

    # Small demo shapes: 16 samples, 64 FPS-sampled points per sample, channel
    # dim fixed by the module (out_size_2 = 256).
    B, P = 16, 64
    feat_f32 = jax.random.normal(k_feat, (B, P, OUT_SIZE_2), dtype=jnp.float32)
    feat_bf16 = feat_f32.astype(jnp.bfloat16)   # "producer already emits bf16"

    # Deterministic parameter init (PyTorch Linear-style uniform fan-in scaling).
    lim1 = 1.0 / (OUT_SIZE_2 ** 0.5)
    w1 = jax.random.uniform(k_w1, (OUT_SIZE_2, HIDDEN), jnp.float32, -lim1, lim1)
    b1 = jax.random.uniform(k_b1, (HIDDEN,), jnp.float32, -lim1, lim1)
    lim2 = 1.0 / (HIDDEN ** 0.5)
    w2 = jax.random.uniform(k_w2, (HIDDEN, NR_CLASSES), jnp.float32, -lim2, lim2)
    b2 = jax.random.uniform(k_b2, (NR_CLASSES,), jnp.float32, -lim2, lim2)

    # Case 1: bf16 features from the producer (bf16 tanh on v6e/v7x, f32 on
    # v5e/older).  bf16 math adds ~1e-3-level deviation in the pooled mean, so
    # the tolerance is loosened accordingly.
    out_bf16 = jax.block_until_ready(net_head_pallas(feat_bf16, w1, b1, w2, b2))
    ref_bf16 = net_head_reference(feat_bf16, w1, b1, w2, b2)
    assert out_bf16.shape == (B, NR_CLASSES)
    assert jnp.allclose(out_bf16, ref_bf16, atol=2e-2, rtol=1e-2), \
        "bf16-feature path mismatch vs reference"

    # Case 2: f32 features (no wrapper-side downcast; f32 compute everywhere).
    out_f32 = jax.block_until_ready(net_head_pallas(feat_f32, w1, b1, w2, b2))
    ref_f32 = net_head_reference(feat_f32, w1, b1, w2, b2)
    assert out_f32.shape == (B, NR_CLASSES)
    assert jnp.allclose(out_f32, ref_f32, atol=5e-3, rtol=1e-3), \
        "f32-feature path mismatch vs reference"

    print("KERNEL_OK")
</pallas_src>

<mosaic_0001>
module attributes {stable_mosaic.version = 11 : i64} {
  func.func @_head_kernel(%arg0: i32, %arg1: i32, %arg2: memref<16x64x256xbf16, #tpu.memory_space<vmem>>, %arg3: memref<256x1024xf32, #tpu.memory_space<vmem>>, %arg4: memref<1x1024xf32, #tpu.memory_space<vmem>>, %arg5: memref<1024x40xf32, #tpu.memory_space<vmem>>, %arg6: memref<1x40xf32, #tpu.memory_space<vmem>>, %arg7: memref<16x40xf32, #tpu.memory_space<vmem>>, %arg8: memref<16x256xf32, #tpu.memory_space<vmem>>) attributes {dimension_semantics = [#tpu.dimension_semantics<parallel>, #tpu.dimension_semantics<arbitrary>], iteration_bounds = array<i64: 1, 1>, scalar_prefetch = 0 : i64, scratch_operands = 1 : i64, tpu.core_type = #tpu.core_type<tc>, window_params = [{transform_indices = @transform_0, window_bounds = array<i64: 16, 64, 256>}, {pipeline_mode = #tpu.pipeline_mode<synchronous>, transform_indices = @transform_1, window_bounds = array<i64: 256, 1024>}, {pipeline_mode = #tpu.pipeline_mode<synchronous>, transform_indices = @transform_2, window_bounds = array<i64: 1, 1024>}, {pipeline_mode = #tpu.pipeline_mode<synchronous>, transform_indices = @transform_3, window_bounds = array<i64: 1024, 40>}, {pipeline_mode = #tpu.pipeline_mode<synchronous>, transform_indices = @transform_4, window_bounds = array<i64: 1, 40>}, {transform_indices = @transform_5, window_bounds = array<i64: 16, 40>}]} {
    %c0_i32 = arith.constant 0 : i32
    %0 = arith.cmpi eq, %arg1, %c0_i32 : i32
    %1 = arith.extui %0 : i1 to i32
    %c0_i32_0 = arith.constant 0 : i32
    %2 = arith.cmpi ne, %1, %c0_i32_0 : i32
    scf.if %2 {
      %cst_10 = arith.constant 0.000000e+00 : f32
      %15 = vector.broadcast %cst_10 : f32 to vector<16x256xf32>
      %c0_11 = arith.constant 0 : index
      %c0_12 = arith.constant 0 : index
      %16 = vector.load %arg8[%c0_11, %c0_12] : memref<16x256xf32, #tpu.memory_space<vmem>>, vector<16x256xf32>
      tpu.vector_store %arg8[%c0_11, %c0_12], %15 {strides = array<i32>} : memref<16x256xf32, #tpu.memory_space<vmem>>, vector<16x256xf32>,
    } else {
    }
    %c0 = arith.constant 0 : index
    %c0_1 = arith.constant 0 : index
    %c0_2 = arith.constant 0 : index
    %3 = vector.load %arg2[%c0, %c0_1, %c0_2] : memref<16x64x256xbf16, #tpu.memory_space<vmem>>, vector<16x64x256xbf16>
    %4 = arith.extf %3 : vector<16x64x256xbf16> to vector<16x64x256xf32>
    %cst = arith.constant 5.000000e-01 : f32
    %5 = vector.broadcast %cst : f32 to vector<16x64x256xf32>
    %6 = arith.mulf %4, %5 : vector<16x64x256xf32>
    %7 = math.tanh %6 : vector<16x64x256xf32>
    %c0_3 = arith.constant 0 : index
    %c0_4 = arith.constant 0 : index
    %8 = vector.load %arg8[%c0_3, %c0_4] : memref<16x256xf32, #tpu.memory_space<vmem>>, vector<16x256xf32>
    %cst_5 = arith.constant dense<0.000000e+00> : vector<16x256xf32>
    %9 = vector.multi_reduction <add>, %7, %cst_5 [1] : vector<16x64x256xf32> to vector<16x256xf32>
    %10 = arith.addf %8, %9 : vector<16x256xf32>
    %c0_6 = arith.constant 0 : index
    %c0_7 = arith.constant 0 : index
    %11 = vector.load %arg8[%c0_6, %c0_7] : memref<16x256xf32, #tpu.memory_space<vmem>>, vector<16x256xf32>
    tpu.vector_store %arg8[%c0_6, %c0_7], %10 {strides = array<i32>} : memref<16x256xf32, #tpu.memory_space<vmem>>, vector<16x256xf32>,
    %c0_i32_8 = arith.constant 0 : i32
    %12 = arith.cmpi eq, %arg1, %c0_i32_8 : i32
    %13 = arith.extui %12 : i1 to i32
    %c0_i32_9 = arith.constant 0 : i32
    %14 = arith.cmpi ne, %13, %c0_i32_9 : i32
    scf.if %14 {
      %c0_10 = arith.constant 0 : index
      %c0_11 = arith.constant 0 : index
      %15 = vector.load %arg8[%c0_10, %c0_11] : memref<16x256xf32, #tpu.memory_space<vmem>>, vector<16x256xf32>
      %cst_12 = arith.constant 7.812500e-03 : f32
      %16 = vector.broadcast %cst_12 : f32 to vector<16x256xf32>
      %17 = arith.mulf %16, %15 : vector<16x256xf32>
      %cst_13 = arith.constant 5.000000e-01 : f32
      %18 = vector.broadcast %cst_13 : f32 to vector<16x256xf32>
      %19 = arith.addf %18, %17 : vector<16x256xf32>
      %c0_14 = arith.constant 0 : index
      %c0_15 = arith.constant 0 : index
      %20 = vector.load %arg3[%c0_14, %c0_15] : memref<256x1024xf32, #tpu.memory_space<vmem>>, vector<256x1024xf32>
      %cst_16 = arith.constant dense<0.000000e+00> : vector<16x1024xf32>
      %21 = tpu.matmul %19, %20, %cst_16 {dimension_numbers = #tpu.dot_dimension_numbers<[1], [0], [0], [1], [0, 0, 1, 1], [], []>} : vector<16x256xf32>, vector<256x1024xf32>, vector<16x1024xf32> -> vector<16x1024xf32>
      %c0_17 = arith.constant 0 : index
      %c0_18 = arith.constant 0 : index
      %22 = vector.load %arg4[%c0_17, %c0_18] : memref<1x1024xf32, #tpu.memory_space<vmem>>, vector<1x1024xf32>
      %23 = vector.broadcast %22 : vector<1x1024xf32> to vector<16x1024xf32>
      %24 = arith.addf %21, %23 : vector<16x1024xf32>
      %cst_19 = arith.constant 0.000000e+00 : f32
      %25 = vector.broadcast %cst_19 : f32 to vector<16x1024xf32>
      %26 = arith.cmpf ogt, %24, %25 : vector<16x1024xf32>
      %cst_20 = arith.constant 0.000000e+00 : f32
      %27 = vector.broadcast %cst_20 : f32 to vector<16x1024xf32>
      %28 = arith.minimumf %24, %27 : vector<16x1024xf32>
      %29 = math.exp %28 : vector<16x1024xf32>
      %cst_21 = arith.constant 1.000000e+00 : f32
      %30 = vector.broadcast %cst_21 : f32 to vector<16x1024xf32>
      %31 = arith.subf %29, %30 : vector<16x1024xf32>
      %32 = arith.select %26, %24, %31 : vector<16x1024xi1>, vector<16x1024xf32>
      %c0_22 = arith.constant 0 : index
      %c0_23 = arith.constant 0 : index
      %33 = vector.load %arg5[%c0_22, %c0_23] : memref<1024x40xf32, #tpu.memory_space<vmem>>, vector<1024x40xf32>
      %cst_24 = arith.constant dense<0.000000e+00> : vector<16x40xf32>
      %34 = tpu.matmul %32, %33, %cst_24 {dimension_numbers = #tpu.dot_dimension_numbers<[1], [0], [0], [1], [0, 0, 1, 1], [], []>} : vector<16x1024xf32>, vector<1024x40xf32>, vector<16x40xf32> -> vector<16x40xf32>
      %c0_25 = arith.constant 0 : index
      %c0_26 = arith.constant 0 : index
      %35 = vector.load %arg6[%c0_25, %c0_26] : memref<1x40xf32, #tpu.memory_space<vmem>>, vector<1x40xf32>
      %36 = vector.broadcast %35 : vector<1x40xf32> to vector<16x40xf32>
      %37 = arith.addf %34, %36 : vector<16x40xf32>
      %cst_27 = arith.constant dense<0xFF800000> : vector<16xf32>
      %38 = vector.multi_reduction <maximumf>, %37, %cst_27 [1] : vector<16x40xf32> to vector<16xf32>
      %39 = vector.shape_cast %38 : vector<16xf32> to vector<16x1xf32>
      %40 = vector.broadcast %39 : vector<16x1xf32> to vector<16x40xf32>
      %41 = arith.subf %37, %40 : vector<16x40xf32>
      %42 = math.exp %41 : vector<16x40xf32>
      %cst_28 = arith.constant dense<0.000000e+00> : vector<16xf32>
      %43 = vector.multi_reduction <add>, %42, %cst_28 [1] : vector<16x40xf32> to vector<16xf32>
      %44 = vector.shape_cast %43 : vector<16xf32> to vector<16x1xf32>
      %45 = math.log %44 : vector<16x1xf32>
      %46 = vector.broadcast %45 : vector<16x1xf32> to vector<16x40xf32>
      %47 = arith.subf %41, %46 : vector<16x40xf32>
      %c0_29 = arith.constant 0 : index
      %c0_30 = arith.constant 0 : index
      %48 = vector.load %arg7[%c0_29, %c0_30] : memref<16x40xf32, #tpu.memory_space<vmem>>, vector<16x40xf32>
      tpu.vector_store %arg7[%c0_29, %c0_30], %47 {strides = array<i32>} : memref<16x40xf32, #tpu.memory_space<vmem>>, vector<16x40xf32>,
    } else {
    }
    return
  }
  func.func @transform_0(%arg0: i32, %arg1: i32) -> (i32, i32, i32) {
    %c0_i32 = arith.constant 0 : i32
    %c0_i32_0 = arith.constant 0 : i32
    return %arg0, %arg1, %c0_i32 : i32, i32, i32
  }
  func.func @transform_1(%arg0: i32, %arg1: i32) -> (i32, i32) {
    %c0_i32 = arith.constant 0 : i32
    %c0_i32_0 = arith.constant 0 : i32
    %c0_i32_1 = arith.constant 0 : i32
    return %c0_i32, %c0_i32_0 : i32, i32
  }
  func.func @transform_2(%arg0: i32, %arg1: i32) -> (i32, i32) {
    %c0_i32 = arith.constant 0 : i32
    %c0_i32_0 = arith.constant 0 : i32
    %c0_i32_1 = arith.constant 0 : i32
    return %c0_i32, %c0_i32_0 : i32, i32
  }
  func.func @transform_3(%arg0: i32, %arg1: i32) -> (i32, i32) {
    %c0_i32 = arith.constant 0 : i32
    %c0_i32_0 = arith.constant 0 : i32
    %c0_i32_1 = arith.constant 0 : i32
    return %c0_i32, %c0_i32_0 : i32, i32
  }
  func.func @transform_4(%arg0: i32, %arg1: i32) -> (i32, i32) {
    %c0_i32 = arith.constant 0 : i32
    %c0_i32_0 = arith.constant 0 : i32
    %c0_i32_1 = arith.constant 0 : i32
    return %c0_i32, %c0_i32_0 : i32, i32
  }
  func.func @transform_5(%arg0: i32, %arg1: i32) -> (i32, i32) {
    %c0_i32 = arith.constant 0 : i32
    %c0_i32_0 = arith.constant 0 : i32
    return %arg0, %c0_i32 : i32, i32
  }
}

</mosaic_0001>

<llo_original>
// kernel: net_head_pallas.1
$region0: #{net_head_pallas.1}
  #allocation0 [shape = 'u32[]', space=smem, size = 0x4, offset = 0x4, fixed_abs, tag = 'smem constant byte address 0x4 - core index']
  #allocation1 [shape = 'u32[144,128]{1,0:T(1,128)}', space=vmem, size = 0x12000, scoped, tag = 'internal scratch']
  #allocation2 [shape = 'f32[16,256]{1,0:T(8,128)}', space=vmem, size = 0x4000, scoped, tag = 'scratch operand']
  %s0 = inlined_call_operand.vmem [shape: bf16[16,64,256], index: 0, kind: input, shape index: {}]
  %s1 = inlined_call_operand.hbm [shape: f32[256,1024], index: 1, kind: input, shape index: {}]
  %s2 = inlined_call_operand.vmem [shape: f32[1,1024], index: 2, kind: input, shape index: {}]
  %s3 = inlined_call_operand.vmem [shape: f32[1024,40], index: 3, kind: input, shape index: {}]
  %s4 = inlined_call_operand.vmem [shape: f32[1,40], index: 4, kind: input, shape index: {}]
  %s5 = inlined_call_operand.hbm [shape: f32[16,40], index: 5, kind: output, shape index: {}]
  %s6 = sld [smem:[#allocation0]]
  $region42: #{net_head_pallas.1} parent=0
    _
  %s8 = ssub.s32 1, %s6
  %s9 = scalar_select 0, %s8, %s6
  $region1: #{net_head_pallas.1} parent=0
    #allocation3 [shape = 'u8[1048576]{0}', space=vmem, size = 0x100000, scoped, tag = 'input window, operand 1, single buffered']
    #allocation4 [shape = 's32[1]{0}', space=sflag, size = 0x4, scoped, tag = 'scoped memory for net_head_pallas.1']
    #allocation5 [shape = 's32[1]{0}', space=sflag, size = 0x4, scoped, tag = 'scoped memory for net_head_pallas.1']
    #allocation6 [shape = 'u8[8192]{0}', space=vmem, size = 0x2000, scoped, tag = 'output window, operand 0, single buffered']
    %10 = vsyncpa [#allocation4], 0
    %11 = vsyncpa [#allocation5], 0
    // Predicated region
    $region2: #{net_head_pallas.1} parent=1 // pred_check
      _
    $region3: #{net_head_pallas.1} parent=1 // pred_check_branch
      %13 = sbr.rel (0) target = $region5
    $region4: #{net_head_pallas.1} parent=1 // pred_region
      _
    $region5: #{net_head_pallas.1} parent=1 // pred_fallthru
      _
    // Predicated region
    $region6: #{net_head_pallas.1} parent=1 // pred_check
      _
    $region7: #{net_head_pallas.1} parent=1 // pred_check_branch
      %15 = sbr.rel (0) target = $region9
    $region8: #{net_head_pallas.1} parent=1 // pred_region
      %s17 = ssub.s32 32768, 32768
      %18 = vsyncadd [#allocation4], %s17
      %s19 = sshll.u32 [#allocation3], 4
      %s20 = int_to_ptr.vmem [resolvable:$true] %s19
      %25 = dma.hbm_to_vmem [thread:$0]  %s1, 32768, %s20, [#allocation4], 1024, 1024, 64
    $region9: #{net_head_pallas.1} parent=1 // pred_fallthru
      _
    // Predicated region
    $region10: #{net_head_pallas.1} parent=1 // pred_check
      _
    $region11: #{net_head_pallas.1} parent=1 // pred_check_branch
      %27 = sbr.rel (0) target = $region13
    $region12: #{net_head_pallas.1} parent=1 // pred_region
      _
    $region13: #{net_head_pallas.1} parent=1 // pred_fallthru
      _
    // Predicated region
    $region14: #{net_head_pallas.1} parent=1 // pred_check
      _
    $region15: #{net_head_pallas.1} parent=1 // pred_check_branch
      %29 = sbr.rel (0) target = $region17
    $region16: #{net_head_pallas.1} parent=1 // pred_region
      _
    $region17: #{net_head_pallas.1} parent=1 // pred_fallthru
      _
    // Predicated region
    $region18: #{net_head_pallas.1} parent=1 // pred_check
      _
    $region19: #{net_head_pallas.1} parent=1 // pred_check_branch
      %31 = sbr.rel (0) target = $region21
    $region20: #{net_head_pallas.1} parent=1 // pred_region
      _
    $region21: #{net_head_pallas.1} parent=1 // pred_fallthru
      _
    // Predicated region
    $region22: #{net_head_pallas.1} parent=1 // pred_check
      _
    $region23: #{net_head_pallas.1} parent=1 // pred_check_branch
      %33 = sbr.rel (0) target = $region25
    $region24: #{net_head_pallas.1} parent=1 // pred_region
      %34 = dma.done [#allocation4], 32768
    $region25: #{net_head_pallas.1} parent=1 // pred_fallthru
      _
    %p35 = scmp.eq.s32.totalorder 0, 0
    // Predicated region
    $region26: #{net_head_pallas.1} parent=1 // pred_check
      %p36 = pneg %p35
    $region27: #{net_head_pallas.1} parent=1 // pred_check_branch
      %38 = sbr.rel (%p36) target = $region29
    $region28: #{net_head_pallas.1} parent=1 // pred_region
      %39 = vst [vmem:[#allocation2] sm:$0xff] 0.0
      %40 = vst [vmem:[#allocation2 + $0x8] sm:$0xff] 0.0
      %41 = vst [vmem:[#allocation2 + $0x10] sm:$0xff] 0.0
      %42 = vst [vmem:[#allocation2 + $0x18] sm:$0xff] 0.0
    $region29: #{net_head_pallas.1} parent=1 // pred_fallthru
      _
    %v43 = vld [vmem:[%s0] sm:$0xff]
    %v44 = vld [vmem:[%s0 + $0x8] sm:$0xff]
    %v45 = vld [vmem:[%s0 + $0x10] sm:$0xff]
    %v46 = vld [vmem:[%s0 + $0x18] sm:$0xff]
    %v47 = vld [vmem:[%s0 + $0x20] sm:$0xff]
    %v48 = vld [vmem:[%s0 + $0x28] sm:$0xff]
    %v49 = vld [vmem:[%s0 + $0x30] sm:$0xff]
    %v50 = vld [vmem:[%s0 + $0x38] sm:$0xff]
    %v51 = vld [vmem:[%s0 + $0x40] sm:$0xff]
    %v52 = vld [vmem:[%s0 + $0x48] sm:$0xff]
    %v53 = vld [vmem:[%s0 + $0x50] sm:$0xff]
    %v54 = vld [vmem:[%s0 + $0x58] sm:$0xff]
    %v55 = vld [vmem:[%s0 + $0x60] sm:$0xff]
    %v56 = vld [vmem:[%s0 + $0x68] sm:$0xff]
    %v57 = vld [vmem:[%s0 + $0x70] sm:$0xff]
    %v58 = vld [vmem:[%s0 + $0x78] sm:$0xff]
    %v59 = vld [vmem:[%s0 + $0x80] sm:$0xff]
    %v60 = vld [vmem:[%s0 + $0x88] sm:$0xff]
    %v61 = vld [vmem:[%s0 + $0x90] sm:$0xff]
    %v62 = vld [vmem:[%s0 + $0x98] sm:$0xff]
    %v63 = vld [vmem:[%s0 + $0xa0] sm:$0xff]
    %v64 = vld [vmem:[%s0 + $0xa8] sm:$0xff]
    %v65 = vld [vmem:[%s0 + $0xb0] sm:$0xff]
    %v66 = vld [vmem:[%s0 + $0xb8] sm:$0xff]
    %v67 = vld [vmem:[%s0 + $0xc0] sm:$0xff]
    %v68 = vld [vmem:[%s0 + $0xc8] sm:$0xff]
    %v69 = vld [vmem:[%s0 + $0xd0] sm:$0xff]
    %v70 = vld [vmem:[%s0 + $0xd8] sm:$0xff]
    %v71 = vld [vmem:[%s0 + $0xe0] sm:$0xff]
    %v72 = vld [vmem:[%s0 + $0xe8] sm:$0xff]
    %v73 = vld [vmem:[%s0 + $0xf0] sm:$0xff]
    %v74 = vld [vmem:[%s0 + $0xf8] sm:$0xff]
    %v75 = vld [vmem:[%s0 + $0x100] sm:$0xff]
    %v76 = vld [vmem:[%s0 + $0x108] sm:$0xff]
    %v77 = vld [vmem:[%s0 + $0x110] sm:$0xff]
    %v78 = vld [vmem:[%s0 + $0x118] sm:$0xff]
    %v79 = vld [vmem:[%s0 + $0x120] sm:$0xff]
    %v80 = vld [vmem:[%s0 + $0x128] sm:$0xff]
    %v81 = vld [vmem:[%s0 + $0x130] sm:$0xff]
    %v82 = vld [vmem:[%s0 + $0x138] sm:$0xff]
    %v83 = vld [vmem:[%s0 + $0x140] sm:$0xff]
    %v84 = vld [vmem:[%s0 + $0x148] sm:$0xff]
    %v85 = vld [vmem:[%s0 + $0x150] sm:$0xff]
    %v86 = vld [vmem:[%s0 + $0x158] sm:$0xff]
    %v87 = vld [vmem:[%s0 + $0x160] sm:$0xff]
    %v88 = vld [vmem:[%s0 + $0x168] sm:$0xff]
    %v89 = vld [vmem:[%s0 + $0x170] sm:$0xff]
    %v90 = vld [vmem:[%s0 + $0x178] sm:$0xff]
    %v91 = vld [vmem:[%s0 + $0x180] sm:$0xff]
    %v92 = vld [vmem:[%s0 + $0x188] sm:$0xff]
    %v93 = vld [vmem:[%s0 + $0x190] sm:$0xff]
    %v94 = vld [vmem:[%s0 + $0x198] sm:$0xff]
    %v95 = vld [vmem:[%s0 + $0x1a0] sm:$0xff]
    %v96 = vld [vmem:[%s0 + $0x1a8] sm:$0xff]
    %v97 = vld [vmem:[%s0 + $0x1b0] sm:$0xff]
    %v98 = vld [vmem:[%s0 + $0x1b8] sm:$0xff]
    %v99 = vld [vmem:[%s0 + $0x1c0] sm:$0xff]
    %v100 = vld [vmem:[%s0 + $0x1c8] sm:$0xff]
    %v101 = vld [vmem:[%s0 + $0x1d0] sm:$0xff]
    %v102 = vld [vmem:[%s0 + $0x1d8] sm:$0xff]
    %v103 = vld [vmem:[%s0 + $0x1e0] sm:$0xff]
    %v104 = vld [vmem:[%s0 + $0x1e8] sm:$0xff]
    %v105 = vld [vmem:[%s0 + $0x1f0] sm:$0xff]
    %v106 = vld [vmem:[%s0 + $0x1f8] sm:$0xff]
    %v107 = vld [vmem:[%s0 + $0x200] sm:$0xff]
    %v108 = vld [vmem:[%s0 + $0x208] sm:$0xff]
    %v109 = vld [vmem:[%s0 + $0x210] sm:$0xff]
    %v110 = vld [vmem:[%s0 + $0x218] sm:$0xff]
    %v111 = vld [vmem:[%s0 + $0x220] sm:$0xff]
    %v112 = vld [vmem:[%s0 + $0x228] sm:$0xff]
    %v113 = vld [vmem:[%s0 + $0x230] sm:$0xff]
    %v114 = vld [vmem:[%s0 + $0x238] sm:$0xff]
    %v115 = vld [vmem:[%s0 + $0x240] sm:$0xff]
    %v116 = vld [vmem:[%s0 + $0x248] sm:$0xff]
    %v117 = vld [vmem:[%s0 + $0x250] sm:$0xff]
    %v118 = vld [vmem:[%s0 + $0x258] sm:$0xff]
    %v119 = vld [vmem:[%s0 + $0x260] sm:$0xff]
    %v120 = vld [vmem:[%s0 + $0x268] sm:$0xff]
    %v121 = vld [vmem:[%s0 + $0x270] sm:$0xff]
    %v122 = vld [vmem:[%s0 + $0x278] sm:$0xff]
    %v123 = vld [vmem:[%s0 + $0x280] sm:$0xff]
    %v124 = vld [vmem:[%s0 + $0x288] sm:$0xff]
    %v125 = vld [vmem:[%s0 + $0x290] sm:$0xff]
    %v126 = vld [vmem:[%s0 + $0x298] sm:$0xff]
    %v127 = vld [vmem:[%s0 + $0x2a0] sm:$0xff]
    %v128 = vld [vmem:[%s0 + $0x2a8] sm:$0xff]
    %v129 = vld [vmem:[%s0 + $0x2b0] sm:$0xff]
    %v130 = vld [vmem:[%s0 + $0x2b8] sm:$0xff]
    %v131 = vld [vmem:[%s0 + $0x2c0] sm:$0xff]
    %v132 = vld [vmem:[%s0 + $0x2c8] sm:$0xff]
    %v133 = vld [vmem:[%s0 + $0x2d0] sm:$0xff]
    %v134 = vld [vmem:[%s0 + $0x2d8] sm:$0xff]
    %v135 = vld [vmem:[%s0 + $0x2e0] sm:$0xff]
    %v136 = vld [vmem:[%s0 + $0x2e8] sm:$0xff]
    %v137 = vld [vmem:[%s0 + $0x2f0] sm:$0xff]
    %v138 = vld [vmem:[%s0 + $0x2f8] sm:$0xff]
    %v139 = vld [vmem:[%s0 + $0x300] sm:$0xff]
    %v140 = vld [vmem:[%s0 + $0x308] sm:$0xff]
    %v141 = vld [vmem:[%s0 + $0x310] sm:$0xff]
    %v142 = vld [vmem:[%s0 + $0x318] sm:$0xff]
    %v143 = vld [vmem:[%s0 + $0x320] sm:$0xff]
    %v144 = vld [vmem:[%s0 + $0x328] sm:$0xff]
    %v145 = vld [vmem:[%s0 + $0x330] sm:$0xff]
    %v146 = vld [vmem:[%s0 + $0x338] sm:$0xff]
    %v147 = vld [vmem:[%s0 + $0x340] sm:$0xff]
    %v148 = vld [vmem:[%s0 + $0x348] sm:$0xff]
    %v149 = vld [vmem:[%s0 + $0x350] sm:$0xff]
    %v150 = vld [vmem:[%s0 + $0x358] sm:$0xff]
    %v151 = vld [vmem:[%s0 + $0x360] sm:$0xff]
    %v152 = vld [vmem:[%s0 + $0x368] sm:$0xff]
    %v153 = vld [vmem:[%s0 + $0x370] sm:$0xff]
    %v154 = vld [vmem:[%s0 + $0x378] sm:$0xff]
    %v155 = vld [vmem:[%s0 + $0x380] sm:$0xff]
    %v156 = vld [vmem:[%s0 + $0x388] sm:$0xff]
    %v157 = vld [vmem:[%s0 + $0x390] sm:$0xff]
    %v158 = vld [vmem:[%s0 + $0x398] sm:$0xff]
    %v159 = vld [vmem:[%s0 + $0x3a0] sm:$0xff]
    %v160 = vld [vmem:[%s0 + $0x3a8] sm:$0xff]
    %v161 = vld [vmem:[%s0 + $0x3b0] sm:$0xff]
    %v162 = vld [vmem:[%s0 + $0x3b8] sm:$0xff]
    %v163 = vld [vmem:[%s0 + $0x3c0] sm:$0xff]
    %v164 = vld [vmem:[%s0 + $0x3c8] sm:$0xff]
    %v165 = vld [vmem:[%s0 + $0x3d0] sm:$0xff]
    %v166 = vld [vmem:[%s0 + $0x3d8] sm:$0xff]
    %v167 = vld [vmem:[%s0 + $0x3e0] sm:$0xff]
    %v168 = vld [vmem:[%s0 + $0x3e8] sm:$0xff]
    %v169 = vld [vmem:[%s0 + $0x3f0] sm:$0xff]
    %v170 = vld [vmem:[%s0 + $0x3f8] sm:$0xff]
    %v171 = vunpack.c.l.bf16 %v43
    %v172 = vunpack.c.h.bf16 %v43
    %v173 = vunpack.c.l.bf16 %v44
    %v174 = vunpack.c.h.bf16 %v44
    %v175 = vunpack.c.l.bf16 %v45
    %v176 = vunpack.c.h.bf16 %v45
    %v177 = vunpack.c.l.bf16 %v46
    %v178 = vunpack.c.h.bf16 %v46
    %v179 = vunpack.c.l.bf16 %v47
    %v180 = vunpack.c.h.bf16 %v47
    %v181 = vunpack.c.l.bf16 %v48
    %v182 = vunpack.c.h.bf16 %v48
    %v183 = vunpack.c.l.bf16 %v49
    %v184 = vunpack.c.h.bf16 %v49
    %v185 = vunpack.c.l.bf16 %v50
    %v186 = vunpack.c.h.bf16 %v50
    %v187 = vunpack.c.l.bf16 %v51
    %v188 = vunpack.c.h.bf16 %v51
    %v189 = vunpack.c.l.bf16 %v52
    %v190 = vunpack.c.h.bf16 %v52
    %v191 = vunpack.c.l.bf16 %v53
    %v192 = vunpack.c.h.bf16 %v53
    %v193 = vunpack.c.l.bf16 %v54
    %v194 = vunpack.c.h.bf16 %v54
    %v195 = vunpack.c.l.bf16 %v55
    %v196 = vunpack.c.h.bf16 %v55
    %v197 = vunpack.c.l.bf16 %v56
    %v198 = vunpack.c.h.bf16 %v56
    %v199 = vunpack.c.l.bf16 %v57
    %v200 = vunpack.c.h.bf16 %v57
    %v201 = vunpack.c.l.bf16 %v58
    %v202 = vunpack.c.h.bf16 %v58
    %v203 = vunpack.c.l.bf16 %v59
    %v204 = vunpack.c.h.bf16 %v59
    %v205 = vunpack.c.l.bf16 %v60
    %v206 = vunpack.c.h.bf16 %v60
    %v207 = vunpack.c.l.bf16 %v61
    %v208 = vunpack.c.h.bf16 %v61
    %v209 = vunpack.c.l.bf16 %v62
    %v210 = vunpack.c.h.bf16 %v62
    %v211 = vunpack.c.l.bf16 %v63
    %v212 = vunpack.c.h.bf16 %v63
    %v213 = vunpack.c.l.bf16 %v64
    %v214 = vunpack.c.h.bf16 %v64
    %v215 = vunpack.c.l.bf16 %v65
    %v216 = vunpack.c.h.bf16 %v65
    %v217 = vunpack.c.l.bf16 %v66
    %v218 = vunpack.c.h.bf16 %v66
    %v219 = vunpack.c.l.bf16 %v67
    %v220 = vunpack.c.h.bf16 %v67
    %v221 = vunpack.c.l.bf16 %v68
    %v222 = vunpack.c.h.bf16 %v68
    %v223 = vunpack.c.l.bf16 %v69
    %v224 = vunpack.c.h.bf16 %v69
    %v225 = vunpack.c.l.bf16 %v70
    %v226 = vunpack.c.h.bf16 %v70
    %v227 = vunpack.c.l.bf16 %v71
    %v228 = vunpack.c.h.bf16 %v71
    %v229 = vunpack.c.l.bf16 %v72
    %v230 = vunpack.c.h.bf16 %v72
    %v231 = vunpack.c.l.bf16 %v73
    %v232 = vunpack.c.h.bf16 %v73
    %v233 = vunpack.c.l.bf16 %v74
    %v234 = vunpack.c.h.bf16 %v74
    %v235 = vunpack.c.l.bf16 %v75
    %v236 = vunpack.c.h.bf16 %v75
    %v237 = vunpack.c.l.bf16 %v76
    %v238 = vunpack.c.h.bf16 %v76
    %v239 = vunpack.c.l.bf16 %v77
    %v240 = vunpack.c.h.bf16 %v77
    %v241 = vunpack.c.l.bf16 %v78
    %v242 = vunpack.c.h.bf16 %v78
    %v243 = vunpack.c.l.bf16 %v79
    %v244 = vunpack.c.h.bf16 %v79
    %v245 = vunpack.c.l.bf16 %v80
    %v246 = vunpack.c.h.bf16 %v80
    %v247 = vunpack.c.l.bf16 %v81
    %v248 = vunpack.c.h.bf16 %v81
    %v249 = vunpack.c.l.bf16 %v82
    %v250 = vunpack.c.h.bf16 %v82
    %v251 = vunpack.c.l.bf16 %v83
    %v252 = vunpack.c.h.bf16 %v83
    %v253 = vunpack.c.l.bf16 %v84
    %v254 = vunpack.c.h.bf16 %v84
    %v255 = vunpack.c.l.bf16 %v85
    %v256 = vunpack.c.h.bf16 %v85
    %v257 = vunpack.c.l.bf16 %v86
    %v258 = vunpack.c.h.bf16 %v86
    %v259 = vunpack.c.l.bf16 %v87
    %v260 = vunpack.c.h.bf16 %v87
    %v261 = vunpack.c.l.bf16 %v88
    %v262 = vunpack.c.h.bf16 %v88
    %v263 = vunpack.c.l.bf16 %v89
    %v264 = vunpack.c.h.bf16 %v89
    %v265 = vunpack.c.l.bf16 %v90
    %v266 = vunpack.c.h.bf16 %v90
    %v267 = vunpack.c.l.bf16 %v91
    %v268 = vunpack.c.h.bf16 %v91
    %v269 = vunpack.c.l.bf16 %v92
    %v270 = vunpack.c.h.bf16 %v92
    %v271 = vunpack.c.l.bf16 %v93
    %v272 = vunpack.c.h.bf16 %v93
    %v273 = vunpack.c.l.bf16 %v94
    %v274 = vunpack.c.h.bf16 %v94
    %v275 = vunpack.c.l.bf16 %v95
    %v276 = vunpack.c.h.bf16 %v95
    %v277 = vunpack.c.l.bf16 %v96
    %v278 = vunpack.c.h.bf16 %v96
    %v279 = vunpack.c.l.bf16 %v97
    %v280 = vunpack.c.h.bf16 %v97
    %v281 = vunpack.c.l.bf16 %v98
    %v282 = vunpack.c.h.bf16 %v98
    %v283 = vunpack.c.l.bf16 %v99
    %v284 = vunpack.c.h.bf16 %v99
    %v285 = vunpack.c.l.bf16 %v100
    %v286 = vunpack.c.h.bf16 %v100
    %v287 = vunpack.c.l.bf16 %v101
    %v288 = vunpack.c.h.bf16 %v101
    %v289 = vunpack.c.l.bf16 %v102
    %v290 = vunpack.c.h.bf16 %v102
    %v291 = vunpack.c.l.bf16 %v103
    %v292 = vunpack.c.h.bf16 %v103
    %v293 = vunpack.c.l.bf16 %v104
    %v294 = vunpack.c.h.bf16 %v104
    %v295 = vunpack.c.l.bf16 %v105
    %v296 = vunpack.c.h.bf16 %v105
    %v297 = vunpack.c.l.bf16 %v106
    %v298 = vunpack.c.h.bf16 %v106
    %v299 = vunpack.c.l.bf16 %v107
    %v300 = vunpack.c.h.bf16 %v107
    %v301 = vunpack.c.l.bf16 %v108
    %v302 = vunpack.c.h.bf16 %v108
    %v303 = vunpack.c.l.bf16 %v109
    %v304 = vunpack.c.h.bf16 %v109
    %v305 = vunpack.c.l.bf16 %v110
    %v306 = vunpack.c.h.bf16 %v110
    %v307 = vunpack.c.l.bf16 %v111
    %v308 = vunpack.c.h.bf16 %v111
    %v309 = vunpack.c.l.bf16 %v112
    %v310 = vunpack.c.h.bf16 %v112
    %v311 = vunpack.c.l.bf16 %v113
    %v312 = vunpack.c.h.bf16 %v113
    %v313 = vunpack.c.l.bf16 %v114
    %v314 = vunpack.c.h.bf16 %v114
    %v315 = vunpack.c.l.bf16 %v115
    %v316 = vunpack.c.h.bf16 %v115
    %v317 = vunpack.c.l.bf16 %v116
    %v318 = vunpack.c.h.bf16 %v116
    %v319 = vunpack.c.l.bf16 %v117
    %v320 = vunpack.c.h.bf16 %v117
    %v321 = vunpack.c.l.bf16 %v118
    %v322 = vunpack.c.h.bf16 %v118
    %v323 = vunpack.c.l.bf16 %v119
    %v324 = vunpack.c.h.bf16 %v119
    %v325 = vunpack.c.l.bf16 %v120
    %v326 = vunpack.c.h.bf16 %v120
    %v327 = vunpack.c.l.bf16 %v121
    %v328 = vunpack.c.h.bf16 %v121
    %v329 = vunpack.c.l.bf16 %v122
    %v330 = vunpack.c.h.bf16 %v122
    %v331 = vunpack.c.l.bf16 %v123
    %v332 = vunpack.c.h.bf16 %v123
    %v333 = vunpack.c.l.bf16 %v124
    %v334 = vunpack.c.h.bf16 %v124
    %v335 = vunpack.c.l.bf16 %v125
    %v336 = vunpack.c.h.bf16 %v125
    %v337 = vunpack.c.l.bf16 %v126
    %v338 = vunpack.c.h.bf16 %v126
    %v339 = vunpack.c.l.bf16 %v127
    %v340 = vunpack.c.h.bf16 %v127
    %v341 = vunpack.c.l.bf16 %v128
    %v342 = vunpack.c.h.bf16 %v128
    %v343 = vunpack.c.l.bf16 %v129
    %v344 = vunpack.c.h.bf16 %v129
    %v345 = vunpack.c.l.bf16 %v130
    %v346 = vunpack.c.h.bf16 %v130
    %v347 = vunpack.c.l.bf16 %v131
    %v348 = vunpack.c.h.bf16 %v131
    %v349 = vunpack.c.l.bf16 %v132
    %v350 = vunpack.c.h.bf16 %v132
    %v351 = vunpack.c.l.bf16 %v133
    %v352 = vunpack.c.h.bf16 %v133
    %v353 = vunpack.c.l.bf16 %v134
    %v354 = vunpack.c.h.bf16 %v134
    %v355 = vunpack.c.l.bf16 %v135
    %v356 = vunpack.c.h.bf16 %v135
    %v357 = vunpack.c.l.bf16 %v136
    %v358 = vunpack.c.h.bf16 %v136
    %v359 = vunpack.c.l.bf16 %v137
    %v360 = vunpack.c.h.bf16 %v137
    %v361 = vunpack.c.l.bf16 %v138
    %v362 = vunpack.c.h.bf16 %v138
    %v363 = vunpack.c.l.bf16 %v139
    %v364 = vunpack.c.h.bf16 %v139
    %v365 = vunpack.c.l.bf16 %v140
    %v366 = vunpack.c.h.bf16 %v140
    %v367 = vunpack.c.l.bf16 %v141
    %v368 = vunpack.c.h.bf16 %v141
    %v369 = vunpack.c.l.bf16 %v142
    %v370 = vunpack.c.h.bf16 %v142
    %v371 = vunpack.c.l.bf16 %v143
    %v372 = vunpack.c.h.bf16 %v143
    %v373 = vunpack.c.l.bf16 %v144
    %v374 = vunpack.c.h.bf16 %v144
    %v375 = vunpack.c.l.bf16 %v145
    %v376 = vunpack.c.h.bf16 %v145
    %v377 = vunpack.c.l.bf16 %v146
    %v378 = vunpack.c.h.bf16 %v146
    %v379 = vunpack.c.l.bf16 %v147
    %v380 = vunpack.c.h.bf16 %v147
    %v381 = vunpack.c.l.bf16 %v148
    %v382 = vunpack.c.h.bf16 %v148
    %v383 = vunpack.c.l.bf16 %v149
    %v384 = vunpack.c.h.bf16 %v149
    %v385 = vunpack.c.l.bf16 %v150
    %v386 = vunpack.c.h.bf16 %v150
    %v387 = vunpack.c.l.bf16 %v151
    %v388 = vunpack.c.h.bf16 %v151
    %v389 = vunpack.c.l.bf16 %v152
    %v390 = vunpack.c.h.bf16 %v152
    %v391 = vunpack.c.l.bf16 %v153
    %v392 = vunpack.c.h.bf16 %v153
    %v393 = vunpack.c.l.bf16 %v154
    %v394 = vunpack.c.h.bf16 %v154
    %v395 = vunpack.c.l.bf16 %v155
    %v396 = vunpack.c.h.bf16 %v155
    %v397 = vunpack.c.l.bf16 %v156
    %v398 = vunpack.c.h.bf16 %v156
    %v399 = vunpack.c.l.bf16 %v157
    %v400 = vunpack.c.h.bf16 %v157
    %v401 = vunpack.c.l.bf16 %v158
    %v402 = vunpack.c.h.bf16 %v158
    %v403 = vunpack.c.l.bf16 %v159
    %v404 = vunpack.c.h.bf16 %v159
    %v405 = vunpack.c.l.bf16 %v160
    %v406 = vunpack.c.h.bf16 %v160
    %v407 = vunpack.c.l.bf16 %v161
    %v408 = vunpack.c.h.bf16 %v161
    %v409 = vunpack.c.l.bf16 %v162
    %v410 = vunpack.c.h.bf16 %v162
    %v411 = vunpack.c.l.bf16 %v163
    %v412 = vunpack.c.h.bf16 %v163
    %v413 = vunpack.c.l.bf16 %v164
    %v414 = vunpack.c.h.bf16 %v164
    %v415 = vunpack.c.l.bf16 %v165
    %v416 = vunpack.c.h.bf16 %v165
    %v417 = vunpack.c.l.bf16 %v166
    %v418 = vunpack.c.h.bf16 %v166
    %v419 = vunpack.c.l.bf16 %v167
    %v420 = vunpack.c.h.bf16 %v167
    %v421 = vunpack.c.l.bf16 %v168
    %v422 = vunpack.c.h.bf16 %v168
    %v423 = vunpack.c.l.bf16 %v169
    %v424 = vunpack.c.h.bf16 %v169
    %v425 = vunpack.c.l.bf16 %v170
    %v426 = vunpack.c.h.bf16 %v170
    %v427 = vmul.f32 %v171, 0.5
    %v428 = vmul.f32 %v172, 0.5
    %v429 = vmul.f32 %v173, 0.5
    %v430 = vmul.f32 %v174, 0.5
    %v431 = vmul.f32 %v175, 0.5
    %v432 = vmul.f32 %v176, 0.5
    %v433 = vmul.f32 %v177, 0.5
    %v434 = vmul.f32 %v178, 0.5
    %v435 = vmul.f32 %v179, 0.5
    %v436 = vmul.f32 %v180, 0.5
    %v437 = vmul.f32 %v181, 0.5
    %v438 = vmul.f32 %v182, 0.5
    %v439 = vmul.f32 %v183, 0.5
    %v440 = vmul.f32 %v184, 0.5
    %v441 = vmul.f32 %v185, 0.5
    %v442 = vmul.f32 %v186, 0.5
    %v443 = vmul.f32 %v187, 0.5
    %v444 = vmul.f32 %v188, 0.5
    %v445 = vmul.f32 %v189, 0.5
    %v446 = vmul.f32 %v190, 0.5
    %v447 = vmul.f32 %v191, 0.5
    %v448 = vmul.f32 %v192, 0.5
    %v449 = vmul.f32 %v193, 0.5
    %v450 = vmul.f32 %v194, 0.5
    %v451 = vmul.f32 %v195, 0.5
    %v452 = vmul.f32 %v196, 0.5
    %v453 = vmul.f32 %v197, 0.5
    %v454 = vmul.f32 %v198, 0.5
    %v455 = vmul.f32 %v199, 0.5
    %v456 = vmul.f32 %v200, 0.5
    %v457 = vmul.f32 %v201, 0.5
    %v458 = vmul.f32 %v202, 0.5
    %v459 = vmul.f32 %v203, 0.5
    %v460 = vmul.f32 %v204, 0.5
    %v461 = vmul.f32 %v205, 0.5
    %v462 = vmul.f32 %v206, 0.5
    %v463 = vmul.f32 %v207, 0.5
    %v464 = vmul.f32 %v208, 0.5
    %v465 = vmul.f32 %v209, 0.5
    %v466 = vmul.f32 %v210, 0.5
    %v467 = vmul.f32 %v211, 0.5
    %v468 = vmul.f32 %v212, 0.5
    %v469 = vmul.f32 %v213, 0.5
    %v470 = vmul.f32 %v214, 0.5
    %v471 = vmul.f32 %v215, 0.5
    %v472 = vmul.f32 %v216, 0.5
    %v473 = vmul.f32 %v217, 0.5
    %v474 = vmul.f32 %v218, 0.5
    %v475 = vmul.f32 %v219, 0.5
    %v476 = vmul.f32 %v220, 0.5
    %v477 = vmul.f32 %v221, 0.5
    %v478 = vmul.f32 %v222, 0.5
    %v479 = vmul.f32 %v223, 0.5
    %v480 = vmul.f32 %v224, 0.5
    %v481 = vmul.f32 %v225, 0.5
    %v482 = vmul.f32 %v226, 0.5
    %v483 = vmul.f32 %v227, 0.5
    %v484 = vmul.f32 %v228, 0.5
    %v485 = vmul.f32 %v229, 0.5
    %v486 = vmul.f32 %v230, 0.5
    %v487 = vmul.f32 %v231, 0.5
    %v488 = vmul.f32 %v232, 0.5
    %v489 = vmul.f32 %v233, 0.5
    %v490 = vmul.f32 %v234, 0.5
    %v491 = vmul.f32 %v235, 0.5
    %v492 = vmul.f32 %v236, 0.5
    %v493 = vmul.f32 %v237, 0.5
    %v494 = vmul.f32 %v238, 0.5
    %v495 = vmul.f32 %v239, 0.5
    %v496 = vmul.f32 %v240, 0.5
    %v497 = vmul.f32 %v241, 0.5
    %v498 = vmul.f32 %v242, 0.5
    %v499 = vmul.f32 %v243, 0.5
    %v500 = vmul.f32 %v244, 0.5
    %v501 = vmul.f32 %v245, 0.5
    %v502 = vmul.f32 %v246, 0.5
    %v503 = vmul.f32 %v247, 0.5
    %v504 = vmul.f32 %v248, 0.5
    %v505 = vmul.f32 %v249, 0.5
    %v506 = vmul.f32 %v250, 0.5
    %v507 = vmul.f32 %v251, 0.5
    %v508 = vmul.f32 %v252, 0.5
    %v509 = vmul.f32 %v253, 0.5
    %v510 = vmul.f32 %v254, 0.5
    %v511 = vmul.f32 %v255, 0.5
    %v512 = vmul.f32 %v256, 0.5
    %v513 = vmul.f32 %v257, 0.5
    %v514 = vmul.f32 %v258, 0.5
    %v515 = vmul.f32 %v259, 0.5
    %v516 = vmul.f32 %v260, 0.5
    %v517 = vmul.f32 %v261, 0.5
    %v518 = vmul.f32 %v262, 0.5
    %v519 = vmul.f32 %v263, 0.5
    %v520 = vmul.f32 %v264, 0.5
    %v521 = vmul.f32 %v265, 0.5
    %v522 = vmul.f32 %v266, 0.5
    %v523 = vmul.f32 %v267, 0.5
    %v524 = vmul.f32 %v268, 0.5
    %v525 = vmul.f32 %v269, 0.5
    %v526 = vmul.f32 %v270, 0.5
    %v527 = vmul.f32 %v271, 0.5
    %v528 = vmul.f32 %v272, 0.5
    %v529 = vmul.f32 %v273, 0.5
    %v530 = vmul.f32 %v274, 0.5
    %v531 = vmul.f32 %v275, 0.5
    %v532 = vmul.f32 %v276, 0.5
    %v533 = vmul.f32 %v277, 0.5
    %v534 = vmul.f32 %v278, 0.5
    %v535 = vmul.f32 %v279, 0.5
    %v536 = vmul.f32 %v280, 0.5
    %v537 = vmul.f32 %v281, 0.5
    %v538 = vmul.f32 %v282, 0.5
    %v539 = vmul.f32 %v283, 0.5
    %v540 = vmul.f32 %v284, 0.5
    %v541 = vmul.f32 %v285, 0.5
    %v542 = vmul.f32 %v286, 0.5
    %v543 = vmul.f32 %v287, 0.5
    %v544 = vmul.f32 %v288, 0.5
    %v545 = vmul.f32 %v289, 0.5
    %v546 = vmul.f32 %v290, 0.5
    %v547 = vmul.f32 %v291, 0.5
    %v548 = vmul.f32 %v292, 0.5
    %v549 = vmul.f32 %v293, 0.5
    %v550 = vmul.f32 %v294, 0.5
    %v551 = vmul.f32 %v295, 0.5
    %v552 = vmul.f32 %v296, 0.5
    %v553 = vmul.f32 %v297, 0.5
    %v554 = vmul.f32 %v298, 0.5
    %v555 = vmul.f32 %v299, 0.5
    %v556 = vmul.f32 %v300, 0.5
    %v557 = vmul.f32 %v301, 0.5
    %v558 = vmul.f32 %v302, 0.5
    %v559 = vmul.f32 %v303, 0.5
    %v560 = vmul.f32 %v304, 0.5
    %v561 = vmul.f32 %v305, 0.5
    %v562 = vmul.f32 %v306, 0.5
    %v563 = vmul.f32 %v307, 0.5
    %v564 = vmul.f32 %v308, 0.5
    %v565 = vmul.f32 %v309, 0.5
    %v566 = vmul.f32 %v310, 0.5
    %v567 = vmul.f32 %v311, 0.5
    %v568 = vmul.f32 %v312, 0.5
    %v569 = vmul.f32 %v313, 0.5
    %v570 = vmul.f32 %v314, 0.5
    %v571 = vmul.f32 %v315, 0.5
    %v572 = vmul.f32 %v316, 0.5
    %v573 = vmul.f32 %v317, 0.5
    %v574 = vmul.f32 %v318, 0.5
    %v575 = vmul.f32 %v319, 0.5
    %v576 = vmul.f32 %v320, 0.5
    %v577 = vmul.f32 %v321, 0.5
    %v578 = vmul.f32 %v322, 0.5
    %v579 = vmul.f32 %v323, 0.5
    %v580 = vmul.f32 %v324, 0.5
    %v581 = vmul.f32 %v325, 0.5
    %v582 = vmul.f32 %v326, 0.5
    %v583 = vmul.f32 %v327, 0.5
    %v584 = vmul.f32 %v328, 0.5
    %v585 = vmul.f32 %v329, 0.5
    %v586 = vmul.f32 %v330, 0.5
    %v587 = vmul.f32 %v331, 0.5
    %v588 = vmul.f32 %v332, 0.5
    %v589 = vmul.f32 %v333, 0.5
    %v590 = vmul.f32 %v334, 0.5
    %v591 = vmul.f32 %v335, 0.5
    %v592 = vmul.f32 %v336, 0.5
    %v593 = vmul.f32 %v337, 0.5
    %v594 = vmul.f32 %v338, 0.5
    %v595 = vmul.f32 %v339, 0.5
    %v596 = vmul.f32 %v340, 0.5
    %v597 = vmul.f32 %v341, 0.5
    %v598 = vmul.f32 %v342, 0.5
    %v599 = vmul.f32 %v343, 0.5
    %v600 = vmul.f32 %v344, 0.5
    %v601 = vmul.f32 %v345, 0.5
    %v602 = vmul.f32 %v346, 0.5
    %v603 = vmul.f32 %v347, 0.5
    %v604 = vmul.f32 %v348, 0.5
    %v605 = vmul.f32 %v349, 0.5
    %v606 = vmul.f32 %v350, 0.5
    %v607 = vmul.f32 %v351, 0.5
    %v608 = vmul.f32 %v352, 0.5
    %v609 = vmul.f32 %v353, 0.5
    %v610 = vmul.f32 %v354, 0.5
    %v611 = vmul.f32 %v355, 0.5
    %v612 = vmul.f32 %v356, 0.5
    %v613 = vmul.f32 %v357, 0.5
    %v614 = vmul.f32 %v358, 0.5
    %v615 = vmul.f32 %v359, 0.5
    %v616 = vmul.f32 %v360, 0.5
    %v617 = vmul.f32 %v361, 0.5
    %v618 = vmul.f32 %v362, 0.5
    %v619 = vmul.f32 %v363, 0.5
    %v620 = vmul.f32 %v364, 0.5
    %v621 = vmul.f32 %v365, 0.5
    %v622 = vmul.f32 %v366, 0.5
    %v623 = vmul.f32 %v367, 0.5
    %v624 = vmul.f32 %v368, 0.5
    %v625 = vmul.f32 %v369, 0.5
    %v626 = vmul.f32 %v370, 0.5
    %v627 = vmul.f32 %v371, 0.5
    %v628 = vmul.f32 %v372, 0.5
    %v629 = vmul.f32 %v373, 0.5
    %v630 = vmul.f32 %v374, 0.5
    %v631 = vmul.f32 %v375, 0.5
    %v632 = vmul.f32 %v376, 0.5
    %v633 = vmul.f32 %v377, 0.5
    %v634 = vmul.f32 %v378, 0.5
    %v635 = vmul.f32 %v379, 0.5
    %v636 = vmul.f32 %v380, 0.5
    %v637 = vmul.f32 %v381, 0.5
    %v638 = vmul.f32 %v382, 0.5
    %v639 = vmul.f32 %v383, 0.5
    %v640 = vmul.f32 %v384, 0.5
    %v641 = vmul.f32 %v385, 0.5
    %v642 = vmul.f32 %v386, 0.5
    %v643 = vmul.f32 %v387, 0.5
    %v644 = vmul.f32 %v388, 0.5
    %v645 = vmul.f32 %v389, 0.5
    %v646 = vmul.f32 %v390, 0.5
    %v647 = vmul.f32 %v391, 0.5
    %v648 = vmul.f32 %v392, 0.5
    %v649 = vmul.f32 %v393, 0.5
    %v650 = vmul.f32 %v394, 0.5
    %v651 = vmul.f32 %v395, 0.5
    %v652 = vmul.f32 %v396, 0.5
    %v653 = vmul.f32 %v397, 0.5
    %v654 = vmul.f32 %v398, 0.5
    %v655 = vmul.f32 %v399, 0.5
    %v656 = vmul.f32 %v400, 0.5
    %v657 = vmul.f32 %v401, 0.5
    %v658 = vmul.f32 %v402, 0.5
    %v659 = vmul.f32 %v403, 0.5
    %v660 = vmul.f32 %v404, 0.5
    %v661 = vmul.f32 %v405, 0.5
    %v662 = vmul.f32 %v406, 0.5
    %v663 = vmul.f32 %v407, 0.5
    %v664 = vmul.f32 %v408, 0.5
    %v665 = vmul.f32 %v409, 0.5
    %v666 = vmul.f32 %v410, 0.5
    %v667 = vmul.f32 %v411, 0.5
    %v668 = vmul.f32 %v412, 0.5
    %v669 = vmul.f32 %v413, 0.5
    %v670 = vmul.f32 %v414, 0.5
    %v671 = vmul.f32 %v415, 0.5
    %v672 = vmul.f32 %v416, 0.5
    %v673 = vmul.f32 %v417, 0.5
    %v674 = vmul.f32 %v418, 0.5
    %v675 = vmul.f32 %v419, 0.5
    %v676 = vmul.f32 %v420, 0.5
    %v677 = vmul.f32 %v421, 0.5
    %v678 = vmul.f32 %v422, 0.5
    %v679 = vmul.f32 %v423, 0.5
    %v680 = vmul.f32 %v424, 0.5
    %v681 = vmul.f32 %v425, 0.5
    %v682 = vmul.f32 %v426, 0.5
    %v683 = vtanh.pop %v427
    %v684 = vtanh.pop %v428
    %v685 = vtanh.pop %v429
    %v686 = vtanh.pop %v430
    %v687 = vtanh.pop %v431
    %v688 = vtanh.pop %v432
    %v689 = vtanh.pop %v433
    %v690 = vtanh.pop %v434
    %v691 = vtanh.pop %v435
    %v692 = vtanh.pop %v436
    %v693 = vtanh.pop %v437
    %v694 = vtanh.pop %v438
    %v695 = vtanh.pop %v439
    %v696 = vtanh.pop %v440
    %v697 = vtanh.pop %v441
    %v698 = vtanh.pop %v442
    %v699 = vtanh.pop %v443
    %v700 = vtanh.pop %v444
    %v701 = vtanh.pop %v445
    %v702 = vtanh.pop %v446
    %v703 = vtanh.pop %v447
    %v704 = vtanh.pop %v448
    %v705 = vtanh.pop %v449
    %v706 = vtanh.pop %v450
    %v707 = vtanh.pop %v451
    %v708 = vtanh.pop %v452
    %v709 = vtanh.pop %v453
    %v710 = vtanh.pop %v454
    %v711 = vtanh.pop %v455
    %v712 = vtanh.pop %v456
    %v713 = vtanh.pop %v457
    %v714 = vtanh.pop %v458
    %v715 = vtanh.pop %v459
    %v716 = vtanh.pop %v460
    %v717 = vtanh.pop %v461
    %v718 = vtanh.pop %v462
    %v719 = vtanh.pop %v463
    %v720 = vtanh.pop %v464
    %v721 = vtanh.pop %v465
    %v722 = vtanh.pop %v466
    %v723 = vtanh.pop %v467
    %v724 = vtanh.pop %v468
    %v725 = vtanh.pop %v469
    %v726 = vtanh.pop %v470
    %v727 = vtanh.pop %v471
    %v728 = vtanh.pop %v472
    %v729 = vtanh.pop %v473
    %v730 = vtanh.pop %v474
    %v731 = vtanh.pop %v475
    %v732 = vtanh.pop %v476
    %v733 = vtanh.pop %v477
    %v734 = vtanh.pop %v478
    %v735 = vtanh.pop %v479
    %v736 = vtanh.pop %v480
    %v737 = vtanh.pop %v481
    %v738 = vtanh.pop %v482
    %v739 = vtanh.pop %v483
    %v740 = vtanh.pop %v484
    %v741 = vtanh.pop %v485
    %v742 = vtanh.pop %v486
    %v743 = vtanh.pop %v487
    %v744 = vtanh.pop %v488
    %v745 = vtanh.pop %v489
    %v746 = vtanh.pop %v490
    %v747 = vtanh.pop %v491
    %v748 = vtanh.pop %v492
    %v749 = vtanh.pop %v493
    %v750 = vtanh.pop %v494
    %v751 = vtanh.pop %v495
    %v752 = vtanh.pop %v496
    %v753 = vtanh.pop %v497
    %v754 = vtanh.pop %v498
    %v755 = vtanh.pop %v499
    %v756 = vtanh.pop %v500
    %v757 = vtanh.pop %v501
    %v758 = vtanh.pop %v502
    %v759 = vtanh.pop %v503
    %v760 = vtanh.pop %v504
    %v761 = vtanh.pop %v505
    %v762 = vtanh.pop %v506
    %v763 = vtanh.pop %v507
    %v764 = vtanh.pop %v508
    %v765 = vtanh.pop %v509
    %v766 = vtanh.pop %v510
    %v767 = vtanh.pop %v511
    %v768 = vtanh.pop %v512
    %v769 = vtanh.pop %v513
    %v770 = vtanh.pop %v514
    %v771 = vtanh.pop %v515
    %v772 = vtanh.pop %v516
    %v773 = vtanh.pop %v517
    %v774 = vtanh.pop %v518
    %v775 = vtanh.pop %v519
    %v776 = vtanh.pop %v520
    %v777 = vtanh.pop %v521
    %v778 = vtanh.pop %v522
    %v779 = vtanh.pop %v523
    %v780 = vtanh.pop %v524
    %v781 = vtanh.pop %v525
    %v782 = vtanh.pop %v526
    %v783 = vtanh.pop %v527
    %v784 = vtanh.pop %v528
    %v785 = vtanh.pop %v529
    %v786 = vtanh.pop %v530
    %v787 = vtanh.pop %v531
    %v788 = vtanh.pop %v532
    %v789 = vtanh.pop %v533
    %v790 = vtanh.pop %v534
    %v791 = vtanh.pop %v535
    %v792 = vtanh.pop %v536
    %v793 = vtanh.pop %v537
    %v794 = vtanh.pop %v538
    %v795 = vtanh.pop %v539
    %v796 = vtanh.pop %v540
    %v797 = vtanh.pop %v541
    %v798 = vtanh.pop %v542
    %v799 = vtanh.pop %v543
    %v800 = vtanh.pop %v544
    %v801 = vtanh.pop %v545
    %v802 = vtanh.pop %v546
    %v803 = vtanh.pop %v547
    %v804 = vtanh.pop %v548
    %v805 = vtanh.pop %v549
    %v806 = vtanh.pop %v550
    %v807 = vtanh.pop %v551
    %v808 = vtanh.pop %v552
    %v809 = vtanh.pop %v553
    %v810 = vtanh.pop %v554
    %v811 = vtanh.pop %v555
    %v812 = vtanh.pop %v556
    %v813 = vtanh.pop %v557
    %v814 = vtanh.pop %v558
    %v815 = vtanh.pop %v559
    %v816 = vtanh.pop %v560
    %v817 = vtanh.pop %v561
    %v818 = vtanh.pop %v562
    %v819 = vtanh.pop %v563
    %v820 = vtanh.pop %v564
    %v821 = vtanh.pop %v565
    %v822 = vtanh.pop %v566
    %v823 = vtanh.pop %v567
    %v824 = vtanh.pop %v568
    %v825 = vtanh.pop %v569
    %v826 = vtanh.pop %v570
    %v827 = vtanh.pop %v571
    %v828 = vtanh.pop %v572
    %v829 = vtanh.pop %v573
    %v830 = vtanh.pop %v574
    %v831 = vtanh.pop %v575
    %v832 = vtanh.pop %v576
    %v833 = vtanh.pop %v577
    %v834 = vtanh.pop %v578
    %v835 = vtanh.pop %v579
    %v836 = vtanh.pop %v580
    %v837 = vtanh.pop %v581
    %v838 = vtanh.pop %v582
    %v839 = vtanh.pop %v583
    %v840 = vtanh.pop %v584
    %v841 = vtanh.pop %v585
    %v842 = vtanh.pop %v586
    %v843 = vtanh.pop %v587
    %v844 = vtanh.pop %v588
    %v845 = vtanh.pop %v589
    %v846 = vtanh.pop %v590
    %v847 = vtanh.pop %v591
    %v848 = vtanh.pop %v592
    %v849 = vtanh.pop %v593
    %v850 = vtanh.pop %v594
    %v851 = vtanh.pop %v595
    %v852 = vtanh.pop %v596
    %v853 = vtanh.pop %v597
    %v854 = vtanh.pop %v598
    %v855 = vtanh.pop %v599
    %v856 = vtanh.pop %v600
    %v857 = vtanh.pop %v601
    %v858 = vtanh.pop %v602
    %v859 = vtanh.pop %v603
    %v860 = vtanh.pop %v604
    %v861 = vtanh.pop %v605
    %v862 = vtanh.pop %v606
    %v863 = vtanh.pop %v607
    %v864 = vtanh.pop %v608
    %v865 = vtanh.pop %v609
    %v866 = vtanh.pop %v610
    %v867 = vtanh.pop %v611
    %v868 = vtanh.pop %v612
    %v869 = vtanh.pop %v613
    %v870 = vtanh.pop %v614
    %v871 = vtanh.pop %v615
    %v872 = vtanh.pop %v616
    %v873 = vtanh.pop %v617
    %v874 = vtanh.pop %v618
    %v875 = vtanh.pop %v619
    %v876 = vtanh.pop %v620
    %v877 = vtanh.pop %v621
    %v878 = vtanh.pop %v622
    %v879 = vtanh.pop %v623
    %v880 = vtanh.pop %v624
    %v881 = vtanh.pop %v625
    %v882 = vtanh.pop %v626
    %v883 = vtanh.pop %v627
    %v884 = vtanh.pop %v628
    %v885 = vtanh.pop %v629
    %v886 = vtanh.pop %v630
    %v887 = vtanh.pop %v631
    %v888 = vtanh.pop %v632
    %v889 = vtanh.pop %v633
    %v890 = vtanh.pop %v634
    %v891 = vtanh.pop %v635
    %v892 = vtanh.pop %v636
    %v893 = vtanh.pop %v637
    %v894 = vtanh.pop %v638
    %v895 = vtanh.pop %v639
    %v896 = vtanh.pop %v640
    %v897 = vtanh.pop %v641
    %v898 = vtanh.pop %v642
    %v899 = vtanh.pop %v643
    %v900 = vtanh.pop %v644
    %v901 = vtanh.pop %v645
    %v902 = vtanh.pop %v646
    %v903 = vtanh.pop %v647
    %v904 = vtanh.pop %v648
    %v905 = vtanh.pop %v649
    %v906 = vtanh.pop %v650
    %v907 = vtanh.pop %v651
    %v908 = vtanh.pop %v652
    %v909 = vtanh.pop %v653
    %v910 = vtanh.pop %v654
    %v911 = vtanh.pop %v655
    %v912 = vtanh.pop %v656
    %v913 = vtanh.pop %v657
    %v914 = vtanh.pop %v658
    %v915 = vtanh.pop %v659
    %v916 = vtanh.pop %v660
    %v917 = vtanh.pop %v661
    %v918 = vtanh.pop %v662
    %v919 = vtanh.pop %v663
    %v920 = vtanh.pop %v664
    %v921 = vtanh.pop %v665
    %v922 = vtanh.pop %v666
    %v923 = vtanh.pop %v667
    %v924 = vtanh.pop %v668
    %v925 = vtanh.pop %v669
    %v926 = vtanh.pop %v670
    %v927 = vtanh.pop %v671
    %v928 = vtanh.pop %v672
    %v929 = vtanh.pop %v673
    %v930 = vtanh.pop %v674
    %v931 = vtanh.pop %v675
    %v932 = vtanh.pop %v676
    %v933 = vtanh.pop %v677
    %v934 = vtanh.pop %v678
    %v935 = vtanh.pop %v679
    %v936 = vtanh.pop %v680
    %v937 = vtanh.pop %v681
    %v938 = vtanh.pop %v682
    %v939 = vld [vmem:[#allocation2] sm:$0xff]
    %v940 = vld [vmem:[#allocation2 + $0x8] sm:$0xff]
    %v941 = vld [vmem:[#allocation2 + $0x10] sm:$0xff]
    %v942 = vld [vmem:[#allocation2 + $0x18] sm:$0xff]
    %v943 = vadd.f32 %v683, %v685
    %v944 = vadd.f32 %v943, %v687
    %v945 = vadd.f32 %v944, %v689
    %v946 = vadd.f32 %v945, %v691
    %v947 = vadd.f32 %v946, %v693
    %v948 = vadd.f32 %v947, %v695
    %v949 = vadd.f32 %v948, %v697
    %v950 = vrot.slane %v949, 4
    %v951 = vadd.f32 %v949, %v950
    %v952 = vrot.slane %v951, 2
    %v953 = vadd.f32 %v951, %v952
    %v954 = vrot.slane %v953, 1
    %v955 = vadd.f32 %v953, %v954
    %v956 = vadd.f32 %v684, %v686
    %v957 = vadd.f32 %v956, %v688
    %v958 = vadd.f32 %v957, %v690
    %v959 = vadd.f32 %v958, %v692
    %v960 = vadd.f32 %v959, %v694
    %v961 = vadd.f32 %v960, %v696
    %v962 = vadd.f32 %v961, %v698
    %v963 = vrot.slane %v962, 4
    %v964 = vadd.f32 %v962, %v963
    %v965 = vrot.slane %v964, 2
    %v966 = vadd.f32 %v964, %v965
    %v967 = vrot.slane %v966, 1
    %v968 = vadd.f32 %v966, %v967
    %v969 = vadd.f32 %v699, %v701
    %v970 = vadd.f32 %v969, %v703
    %v971 = vadd.f32 %v970, %v705
    %v972 = vadd.f32 %v971, %v707
    %v973 = vadd.f32 %v972, %v709
    %v974 = vadd.f32 %v973, %v711
    %v975 = vadd.f32 %v974, %v713
    %v976 = vrot.slane %v975, 4
    %v977 = vadd.f32 %v975, %v976
    %v978 = vrot.slane %v977, 2
    %v979 = vadd.f32 %v977, %v978
    %v980 = vrot.slane %v979, 1
    %v981 = vadd.f32 %v979, %v980
    %v982 = vadd.f32 %v700, %v702
    %v983 = vadd.f32 %v982, %v704
    %v984 = vadd.f32 %v983, %v706
    %v985 = vadd.f32 %v984, %v708
    %v986 = vadd.f32 %v985, %v710
    %v987 = vadd.f32 %v986, %v712
    %v988 = vadd.f32 %v987, %v714
    %v989 = vrot.slane %v988, 4
    %v990 = vadd.f32 %v988, %v989
    %v991 = vrot.slane %v990, 2
    %v992 = vadd.f32 %v990, %v991
    %v993 = vrot.slane %v992, 1
    %v994 = vadd.f32 %v992, %v993
    %v995 = vadd.f32 %v715, %v717
    %v996 = vadd.f32 %v995, %v719
    %v997 = vadd.f32 %v996, %v721
    %v998 = vadd.f32 %v997, %v723
    %v999 = vadd.f32 %v998, %v725
    %v1000 = vadd.f32 %v999, %v727
    %v1001 = vadd.f32 %v1000, %v729
    %v1002 = vrot.slane %v1001, 4
    %v1003 = vadd.f32 %v1001, %v1002
    %v1004 = vrot.slane %v1003, 2
    %v1005 = vadd.f32 %v1003, %v1004
    %v1006 = vrot.slane %v1005, 1
    %v1007 = vadd.f32 %v1005, %v1006
    %v1008 = vadd.f32 %v716, %v718
    %v1009 = vadd.f32 %v1008, %v720
    %v1010 = vadd.f32 %v1009, %v722
    %v1011 = vadd.f32 %v1010, %v724
    %v1012 = vadd.f32 %v1011, %v726
    %v1013 = vadd.f32 %v1012, %v728
    %v1014 = vadd.f32 %v1013, %v730
    %v1015 = vrot.slane %v1014, 4
    %v1016 = vadd.f32 %v1014, %v1015
    %v1017 = vrot.slane %v1016, 2
    %v1018 = vadd.f32 %v1016, %v1017
    %v1019 = vrot.slane %v1018, 1
    %v1020 = vadd.f32 %v1018, %v1019
    %v1021 = vadd.f32 %v731, %v733
    %v1022 = vadd.f32 %v1021, %v735
    %v1023 = vadd.f32 %v1022, %v737
    %v1024 = vadd.f32 %v1023, %v739
    %v1025 = vadd.f32 %v1024, %v741
    %v1026 = vadd.f32 %v1025, %v743
    %v1027 = vadd.f32 %v1026, %v745
    %v1028 = vrot.slane %v1027, 4
    %v1029 = vadd.f32 %v1027, %v1028
    %v1030 = vrot.slane %v1029, 2
    %v1031 = vadd.f32 %v1029, %v1030
    %v1032 = vrot.slane %v1031, 1
    %v1033 = vadd.f32 %v1031, %v1032
    %v1034 = vadd.f32 %v732, %v734
    %v1035 = vadd.f32 %v1034, %v736
    %v1036 = vadd.f32 %v1035, %v738
    %v1037 = vadd.f32 %v1036, %v740
    %v1038 = vadd.f32 %v1037, %v742
    %v1039 = vadd.f32 %v1038, %v744
    %v1040 = vadd.f32 %v1039, %v746
    %v1041 = vrot.slane %v1040, 4
    %v1042 = vadd.f32 %v1040, %v1041
    %v1043 = vrot.slane %v1042, 2
    %v1044 = vadd.f32 %v1042, %v1043
    %v1045 = vrot.slane %v1044, 1
    %v1046 = vadd.f32 %v1044, %v1045
    %v1047 = vadd.f32 %v747, %v749
    %v1048 = vadd.f32 %v1047, %v751
    %v1049 = vadd.f32 %v1048, %v753
    %v1050 = vadd.f32 %v1049, %v755
    %v1051 = vadd.f32 %v1050, %v757
    %v1052 = vadd.f32 %v1051, %v759
    %v1053 = vadd.f32 %v1052, %v761
    %v1054 = vrot.slane %v1053, 4
    %v1055 = vadd.f32 %v1053, %v1054
    %v1056 = vrot.slane %v1055, 2
    %v1057 = vadd.f32 %v1055, %v1056
    %v1058 = vrot.slane %v1057, 1
    %v1059 = vadd.f32 %v1057, %v1058
    %v1060 = vadd.f32 %v748, %v750
    %v1061 = vadd.f32 %v1060, %v752
    %v1062 = vadd.f32 %v1061, %v754
    %v1063 = vadd.f32 %v1062, %v756
    %v1064 = vadd.f32 %v1063, %v758
    %v1065 = vadd.f32 %v1064, %v760
    %v1066 = vadd.f32 %v1065, %v762
    %v1067 = vrot.slane %v1066, 4
    %v1068 = vadd.f32 %v1066, %v1067
    %v1069 = vrot.slane %v1068, 2
    %v1070 = vadd.f32 %v1068, %v1069
    %v1071 = vrot.slane %v1070, 1
    %v1072 = vadd.f32 %v1070, %v1071
    %v1073 = vadd.f32 %v763, %v765
    %v1074 = vadd.f32 %v1073, %v767
    %v1075 = vadd.f32 %v1074, %v769
    %v1076 = vadd.f32 %v1075, %v771
    %v1077 = vadd.f32 %v1076, %v773
    %v1078 = vadd.f32 %v1077, %v775
    %v1079 = vadd.f32 %v1078, %v777
    %v1080 = vrot.slane %v1079, 4
    %v1081 = vadd.f32 %v1079, %v1080
    %v1082 = vrot.slane %v1081, 2
    %v1083 = vadd.f32 %v1081, %v1082
    %v1084 = vrot.slane %v1083, 1
    %v1085 = vadd.f32 %v1083, %v1084
    %v1086 = vadd.f32 %v764, %v766
    %v1087 = vadd.f32 %v1086, %v768
    %v1088 = vadd.f32 %v1087, %v770
    %v1089 = vadd.f32 %v1088, %v772
    %v1090 = vadd.f32 %v1089, %v774
    %v1091 = vadd.f32 %v1090, %v776
    %v1092 = vadd.f32 %v1091, %v778
    %v1093 = vrot.slane %v1092, 4
    %v1094 = vadd.f32 %v1092, %v1093
    %v1095 = vrot.slane %v1094, 2
    %v1096 = vadd.f32 %v1094, %v1095
    %v1097 = vrot.slane %v1096, 1
    %v1098 = vadd.f32 %v1096, %v1097
    %v1099 = vadd.f32 %v779, %v781
    %v1100 = vadd.f32 %v1099, %v783
    %v1101 = vadd.f32 %v1100, %v785
    %v1102 = vadd.f32 %v1101, %v787
    %v1103 = vadd.f32 %v1102, %v789
    %v1104 = vadd.f32 %v1103, %v791
    %v1105 = vadd.f32 %v1104, %v793
    %v1106 = vrot.slane %v1105, 4
    %v1107 = vadd.f32 %v1105, %v1106
    %v1108 = vrot.slane %v1107, 2
    %v1109 = vadd.f32 %v1107, %v1108
    %v1110 = vrot.slane %v1109, 1
    %v1111 = vadd.f32 %v1109, %v1110
    %v1112 = vadd.f32 %v780, %v782
    %v1113 = vadd.f32 %v1112, %v784
    %v1114 = vadd.f32 %v1113, %v786
    %v1115 = vadd.f32 %v1114, %v788
    %v1116 = vadd.f32 %v1115, %v790
    %v1117 = vadd.f32 %v1116, %v792
    %v1118 = vadd.f32 %v1117, %v794
    %v1119 = vrot.slane %v1118, 4
    %v1120 = vadd.f32 %v1118, %v1119
    %v1121 = vrot.slane %v1120, 2
    %v1122 = vadd.f32 %v1120, %v1121
    %v1123 = vrot.slane %v1122, 1
    %v1124 = vadd.f32 %v1122, %v1123
    %v1125 = vadd.f32 %v795, %v797
    %v1126 = vadd.f32 %v1125, %v799
    %v1127 = vadd.f32 %v1126, %v801
    %v1128 = vadd.f32 %v1127, %v803
    %v1129 = vadd.f32 %v1128, %v805
    %v1130 = vadd.f32 %v1129, %v807
    %v1131 = vadd.f32 %v1130, %v809
    %v1132 = vrot.slane %v1131, 4
    %v1133 = vadd.f32 %v1131, %v1132
    %v1134 = vrot.slane %v1133, 2
    %v1135 = vadd.f32 %v1133, %v1134
    %v1136 = vrot.slane %v1135, 1
    %v1137 = vadd.f32 %v1135, %v1136
    %v1138 = vadd.f32 %v796, %v798
    %v1139 = vadd.f32 %v1138, %v800
    %v1140 = vadd.f32 %v1139, %v802
    %v1141 = vadd.f32 %v1140, %v804
    %v1142 = vadd.f32 %v1141, %v806
    %v1143 = vadd.f32 %v1142, %v808
    %v1144 = vadd.f32 %v1143, %v810
    %v1145 = vrot.slane %v1144, 4
    %v1146 = vadd.f32 %v1144, %v1145
    %v1147 = vrot.slane %v1146, 2
    %v1148 = vadd.f32 %v1146, %v1147
    %v1149 = vrot.slane %v1148, 1
    %v1150 = vadd.f32 %v1148, %v1149
    %v1151 = vadd.f32 %v811, %v813
    %v1152 = vadd.f32 %v1151, %v815
    %v1153 = vadd.f32 %v1152, %v817
    %v1154 = vadd.f32 %v1153, %v819
    %v1155 = vadd.f32 %v1154, %v821
    %v1156 = vadd.f32 %v1155, %v823
    %v1157 = vadd.f32 %v1156, %v825
    %v1158 = vrot.slane %v1157, 4
    %v1159 = vadd.f32 %v1157, %v1158
    %v1160 = vrot.slane %v1159, 2
    %v1161 = vadd.f32 %v1159, %v1160
    %v1162 = vrot.slane %v1161, 1
    %v1163 = vadd.f32 %v1161, %v1162
    %v1164 = vadd.f32 %v812, %v814
    %v1165 = vadd.f32 %v1164, %v816
    %v1166 = vadd.f32 %v1165, %v818
    %v1167 = vadd.f32 %v1166, %v820
    %v1168 = vadd.f32 %v1167, %v822
    %v1169 = vadd.f32 %v1168, %v824
    %v1170 = vadd.f32 %v1169, %v826
    %v1171 = vrot.slane %v1170, 4
    %v1172 = vadd.f32 %v1170, %v1171
    %v1173 = vrot.slane %v1172, 2
    %v1174 = vadd.f32 %v1172, %v1173
    %v1175 = vrot.slane %v1174, 1
    %v1176 = vadd.f32 %v1174, %v1175
    %v1177 = vadd.f32 %v827, %v829
    %v1178 = vadd.f32 %v1177, %v831
    %v1179 = vadd.f32 %v1178, %v833
    %v1180 = vadd.f32 %v1179, %v835
    %v1181 = vadd.f32 %v1180, %v837
    %v1182 = vadd.f32 %v1181, %v839
    %v1183 = vadd.f32 %v1182, %v841
    %v1184 = vrot.slane %v1183, 4
    %v1185 = vadd.f32 %v1183, %v1184
    %v1186 = vrot.slane %v1185, 2
    %v1187 = vadd.f32 %v1185, %v1186
    %v1188 = vrot.slane %v1187, 1
    %v1189 = vadd.f32 %v1187, %v1188
    %v1190 = vadd.f32 %v828, %v830
    %v1191 = vadd.f32 %v1190, %v832
    %v1192 = vadd.f32 %v1191, %v834
    %v1193 = vadd.f32 %v1192, %v836
    %v1194 = vadd.f32 %v1193, %v838
    %v1195 = vadd.f32 %v1194, %v840
    %v1196 = vadd.f32 %v1195, %v842
    %v1197 = vrot.slane %v1196, 4
    %v1198 = vadd.f32 %v1196, %v1197
    %v1199 = vrot.slane %v1198, 2
    %v1200 = vadd.f32 %v1198, %v1199
    %v1201 = vrot.slane %v1200, 1
    %v1202 = vadd.f32 %v1200, %v1201
    %v1203 = vadd.f32 %v843, %v845
    %v1204 = vadd.f32 %v1203, %v847
    %v1205 = vadd.f32 %v1204, %v849
    %v1206 = vadd.f32 %v1205, %v851
    %v1207 = vadd.f32 %v1206, %v853
    %v1208 = vadd.f32 %v1207, %v855
    %v1209 = vadd.f32 %v1208, %v857
    %v1210 = vrot.slane %v1209, 4
    %v1211 = vadd.f32 %v1209, %v1210
    %v1212 = vrot.slane %v1211, 2
    %v1213 = vadd.f32 %v1211, %v1212
    %v1214 = vrot.slane %v1213, 1
    %v1215 = vadd.f32 %v1213, %v1214
    %v1216 = vadd.f32 %v844, %v846
    %v1217 = vadd.f32 %v1216, %v848
    %v1218 = vadd.f32 %v1217, %v850
    %v1219 = vadd.f32 %v1218, %v852
    %v1220 = vadd.f32 %v1219, %v854
    %v1221 = vadd.f32 %v1220, %v856
    %v1222 = vadd.f32 %v1221, %v858
    %v1223 = vrot.slane %v1222, 4
    %v1224 = vadd.f32 %v1222, %v1223
    %v1225 = vrot.slane %v1224, 2
    %v1226 = vadd.f32 %v1224, %v1225
    %v1227 = vrot.slane %v1226, 1
    %v1228 = vadd.f32 %v1226, %v1227
    %v1229 = vadd.f32 %v859, %v861
    %v1230 = vadd.f32 %v1229, %v863
    %v1231 = vadd.f32 %v1230, %v865
    %v1232 = vadd.f32 %v1231, %v867
    %v1233 = vadd.f32 %v1232, %v869
    %v1234 = vadd.f32 %v1233, %v871
    %v1235 = vadd.f32 %v1234, %v873
    %v1236 = vrot.slane %v1235, 4
    %v1237 = vadd.f32 %v1235, %v1236
    %v1238 = vrot.slane %v1237, 2
    %v1239 = vadd.f32 %v1237, %v1238
    %v1240 = vrot.slane %v1239, 1
    %v1241 = vadd.f32 %v1239, %v1240
    %v1242 = vadd.f32 %v860, %v862
    %v1243 = vadd.f32 %v1242, %v864
    %v1244 = vadd.f32 %v1243, %v866
    %v1245 = vadd.f32 %v1244, %v868
    %v1246 = vadd.f32 %v1245, %v870
    %v1247 = vadd.f32 %v1246, %v872
    %v1248 = vadd.f32 %v1247, %v874
    %v1249 = vrot.slane %v1248, 4
    %v1250 = vadd.f32 %v1248, %v1249
    %v1251 = vrot.slane %v1250, 2
    %v1252 = vadd.f32 %v1250, %v1251
    %v1253 = vrot.slane %v1252, 1
    %v1254 = vadd.f32 %v1252, %v1253
    %v1255 = vadd.f32 %v875, %v877
    %v1256 = vadd.f32 %v1255, %v879
    %v1257 = vadd.f32 %v1256, %v881
    %v1258 = vadd.f32 %v1257, %v883
    %v1259 = vadd.f32 %v1258, %v885
    %v1260 = vadd.f32 %v1259, %v887
    %v1261 = vadd.f32 %v1260, %v889
    %v1262 = vrot.slane %v1261, 4
    %v1263 = vadd.f32 %v1261, %v1262
    %v1264 = vrot.slane %v1263, 2
    %v1265 = vadd.f32 %v1263, %v1264
    %v1266 = vrot.slane %v1265, 1
    %v1267 = vadd.f32 %v1265, %v1266
    %v1268 = vadd.f32 %v876, %v878
    %v1269 = vadd.f32 %v1268, %v880
    %v1270 = vadd.f32 %v1269, %v882
    %v1271 = vadd.f32 %v1270, %v884
    %v1272 = vadd.f32 %v1271, %v886
    %v1273 = vadd.f32 %v1272, %v888
    %v1274 = vadd.f32 %v1273, %v890
    %v1275 = vrot.slane %v1274, 4
    %v1276 = vadd.f32 %v1274, %v1275
    %v1277 = vrot.slane %v1276, 2
    %v1278 = vadd.f32 %v1276, %v1277
    %v1279 = vrot.slane %v1278, 1
    %v1280 = vadd.f32 %v1278, %v1279
    %v1281 = vadd.f32 %v891, %v893
    %v1282 = vadd.f32 %v1281, %v895
    %v1283 = vadd.f32 %v1282, %v897
    %v1284 = vadd.f32 %v1283, %v899
    %v1285 = vadd.f32 %v1284, %v901
    %v1286 = vadd.f32 %v1285, %v903
    %v1287 = vadd.f32 %v1286, %v905
    %v1288 = vrot.slane %v1287, 4
    %v1289 = vadd.f32 %v1287, %v1288
    %v1290 = vrot.slane %v1289, 2
    %v1291 = vadd.f32 %v1289, %v1290
    %v1292 = vrot.slane %v1291, 1
    %v1293 = vadd.f32 %v1291, %v1292
    %v1294 = vadd.f32 %v892, %v894
    %v1295 = vadd.f32 %v1294, %v896
    %v1296 = vadd.f32 %v1295, %v898
    %v1297 = vadd.f32 %v1296, %v900
    %v1298 = vadd.f32 %v1297, %v902
    %v1299 = vadd.f32 %v1298, %v904
    %v1300 = vadd.f32 %v1299, %v906
    %v1301 = vrot.slane %v1300, 4
    %v1302 = vadd.f32 %v1300, %v1301
    %v1303 = vrot.slane %v1302, 2
    %v1304 = vadd.f32 %v1302, %v1303
    %v1305 = vrot.slane %v1304, 1
    %v1306 = vadd.f32 %v1304, %v1305
    %v1307 = vadd.f32 %v907, %v909
    %v1308 = vadd.f32 %v1307, %v911
    %v1309 = vadd.f32 %v1308, %v913
    %v1310 = vadd.f32 %v1309, %v915
    %v1311 = vadd.f32 %v1310, %v917
    %v1312 = vadd.f32 %v1311, %v919
    %v1313 = vadd.f32 %v1312, %v921
    %v1314 = vrot.slane %v1313, 4
    %v1315 = vadd.f32 %v1313, %v1314
    %v1316 = vrot.slane %v1315, 2
    %v1317 = vadd.f32 %v1315, %v1316
    %v1318 = vrot.slane %v1317, 1
    %v1319 = vadd.f32 %v1317, %v1318
    %v1320 = vadd.f32 %v908, %v910
    %v1321 = vadd.f32 %v1320, %v912
    %v1322 = vadd.f32 %v1321, %v914
    %v1323 = vadd.f32 %v1322, %v916
    %v1324 = vadd.f32 %v1323, %v918
    %v1325 = vadd.f32 %v1324, %v920
    %v1326 = vadd.f32 %v1325, %v922
    %v1327 = vrot.slane %v1326, 4
    %v1328 = vadd.f32 %v1326, %v1327
    %v1329 = vrot.slane %v1328, 2
    %v1330 = vadd.f32 %v1328, %v1329
    %v1331 = vrot.slane %v1330, 1
    %v1332 = vadd.f32 %v1330, %v1331
    %v1333 = vadd.f32 %v923, %v925
    %v1334 = vadd.f32 %v1333, %v927
    %v1335 = vadd.f32 %v1334, %v929
    %v1336 = vadd.f32 %v1335, %v931
    %v1337 = vadd.f32 %v1336, %v933
    %v1338 = vadd.f32 %v1337, %v935
    %v1339 = vadd.f32 %v1338, %v937
    %v1340 = vrot.slane %v1339, 4
    %v1341 = vadd.f32 %v1339, %v1340
    %v1342 = vrot.slane %v1341, 2
    %v1343 = vadd.f32 %v1341, %v1342
    %v1344 = vrot.slane %v1343, 1
    %v1345 = vadd.f32 %v1343, %v1344
    %v1346 = vadd.f32 %v924, %v926
    %v1347 = vadd.f32 %v1346, %v928
    %v1348 = vadd.f32 %v1347, %v930
    %v1349 = vadd.f32 %v1348, %v932
    %v1350 = vadd.f32 %v1349, %v934
    %v1351 = vadd.f32 %v1350, %v936
    %v1352 = vadd.f32 %v1351, %v938
    %v1353 = vrot.slane %v1352, 4
    %v1354 = vadd.f32 %v1352, %v1353
    %v1355 = vrot.slane %v1354, 2
    %v1356 = vadd.f32 %v1354, %v1355
    %v1357 = vrot.slane %v1356, 1
    %v1358 = vadd.f32 %v1356, %v1357
    %vm1391 = vcmask 1041409
    %v1392 = vsel %vm1391, %v981, %v955
    %vm1393 = vcmask 1042434
    %v1394 = vsel %vm1393, %v1007, %v1392
    %vm1395 = vcmask 1043459
    %v1396 = vsel %vm1395, %v1033, %v1394
    %vm1397 = vcmask 1044484
    %v1398 = vsel %vm1397, %v1059, %v1396
    %vm1399 = vcmask 1045509
    %v1400 = vsel %vm1399, %v1085, %v1398
    %vm1401 = vcmask 1046534
    %v1402 = vsel %vm1401, %v1111, %v1400
    %vm1403 = vcmask 1047559
    %v1404 = vsel %vm1403, %v1137, %v1402
    %v1405 = vsel %vm1391, %v994, %v968
    %v1406 = vsel %vm1393, %v1020, %v1405
    %v1407 = vsel %vm1395, %v1046, %v1406
    %v1408 = vsel %vm1397, %v1072, %v1407
    %v1409 = vsel %vm1399, %v1098, %v1408
    %v1410 = vsel %vm1401, %v1124, %v1409
    %v1411 = vsel %vm1403, %v1150, %v1410
    %v1412 = vsel %vm1391, %v1189, %v1163
    %v1413 = vsel %vm1393, %v1215, %v1412
    %v1414 = vsel %vm1395, %v1241, %v1413
    %v1415 = vsel %vm1397, %v1267, %v1414
    %v1416 = vsel %vm1399, %v1293, %v1415
    %v1417 = vsel %vm1401, %v1319, %v1416
    %v1418 = vsel %vm1403, %v1345, %v1417
    %v1419 = vsel %vm1391, %v1202, %v1176
    %v1420 = vsel %vm1393, %v1228, %v1419
    %v1421 = vsel %vm1395, %v1254, %v1420
    %v1422 = vsel %vm1397, %v1280, %v1421
    %v1423 = vsel %vm1399, %v1306, %v1422
    %v1424 = vsel %vm1401, %v1332, %v1423
    %v1425 = vsel %vm1403, %v1358, %v1424
    %v1430 = vadd.f32 %v939, %v1404
    %v1431 = vadd.f32 %v940, %v1411
    %v1432 = vadd.f32 %v941, %v1418
    %v1433 = vadd.f32 %v942, %v1425
    %1434 = vst [vmem:[#allocation2] sm:$0xff] %v1430
    %1435 = vst [vmem:[#allocation2 + $0x8] sm:$0xff] %v1431
    %1436 = vst [vmem:[#allocation2 + $0x10] sm:$0xff] %v1432
    %1437 = vst [vmem:[#allocation2 + $0x18] sm:$0xff] %v1433
    // Predicated region
    $region30: #{net_head_pallas.1} parent=1 // pred_check
      %p1438 = pneg %p35
    $region31: #{net_head_pallas.1} parent=1 // pred_check_branch
      %1440 = sbr.rel (%p1438) target = $region33
    $region32: #{net_head_pallas.1} parent=1 // pred_region
      %v1441 = vld [vmem:[#allocation2] sm:$0xff]
      %v1442 = vld [vmem:[#allocation2 + $0x8] sm:$0xff]
      %v1443 = vld [vmem:[#allocation2 + $0x10] sm:$0xff]
      %v1444 = vld [vmem:[#allocation2 + $0x18] sm:$0xff]
      %v1445 = vmul.f32 %v1441, 0.0078125
      %v1446 = vmul.f32 %v1442, 0.0078125
      %v1447 = vmul.f32 %v1443, 0.0078125
      %v1448 = vmul.f32 %v1444, 0.0078125
      %v1449 = vadd.f32 %v1445, 0.5
      %v1450 = vadd.f32 %v1446, 0.5
      %v1451 = vadd.f32 %v1447, 0.5
      %v1452 = vadd.f32 %v1448, 0.5
      %v1453 = vld [vmem:[#allocation3] sm:$0xff]
      %v1454 = vld [vmem:[#allocation3 + $0x8] sm:$0xff]
      %v1455 = vld [vmem:[#allocation3 + $0x10] sm:$0xff]
      %v1456 = vld [vmem:[#allocation3 + $0x18] sm:$0xff]
      %v1457 = vld [vmem:[#allocation3 + $0x20] sm:$0xff]
      %v1458 = vld [vmem:[#allocation3 + $0x28] sm:$0xff]
      %v1459 = vld [vmem:[#allocation3 + $0x30] sm:$0xff]
      %v1460 = vld [vmem:[#allocation3 + $0x38] sm:$0xff]
      %v1461 = vld [vmem:[#allocation3 + $0x40] sm:$0xff]
      %v1462 = vld [vmem:[#allocation3 + $0x48] sm:$0xff]
      %v1463 = vld [vmem:[#allocation3 + $0x50] sm:$0xff]
      %v1464 = vld [vmem:[#allocation3 + $0x58] sm:$0xff]
      %v1465 = vld [vmem:[#allocation3 + $0x60] sm:$0xff]
      %v1466 = vld [vmem:[#allocation3 + $0x68] sm:$0xff]
      %v1467 = vld [vmem:[#allocation3 + $0x70] sm:$0xff]
      %v1468 = vld [vmem:[#allocation3 + $0x78] sm:$0xff]
      %v1469 = vld [vmem:[#allocation3 + $0x80] sm:$0xff]
      %v1470 = vld [vmem:[#allocation3 + $0x88] sm:$0xff]
      %v1471 = vld [vmem:[#allocation3 + $0x90] sm:$0xff]
      %v1472 = vld [vmem:[#allocation3 + $0x98] sm:$0xff]
      %v1473 = vld [vmem:[#allocation3 + $0xa0] sm:$0xff]
      %v1474 = vld [vmem:[#allocation3 + $0xa8] sm:$0xff]
      %v1475 = vld [vmem:[#allocation3 + $0xb0] sm:$0xff]
      %v1476 = vld [vmem:[#allocation3 + $0xb8] sm:$0xff]
      %v1477 = vld [vmem:[#allocation3 + $0xc0] sm:$0xff]
      %v1478 = vld [vmem:[#allocation3 + $0xc8] sm:$0xff]
      %v1479 = vld [vmem:[#allocation3 + $0xd0] sm:$0xff]
      %v1480 = vld [vmem:[#allocation3 + $0xd8] sm:$0xff]
      %v1481 = vld [vmem:[#allocation3 + $0xe0] sm:$0xff]
      %v1482 = vld [vmem:[#allocation3 + $0xe8] sm:$0xff]
      %v1483 = vld [vmem:[#allocation3 + $0xf0] sm:$0xff]
      %v1484 = vld [vmem:[#allocation3 + $0xf8] sm:$0xff]
      %v1485 = vld [vmem:[#allocation3 + $0x100] sm:$0xff]
      %v1486 = vld [vmem:[#allocation3 + $0x108] sm:$0xff]
      %v1487 = vld [vmem:[#allocation3 + $0x110] sm:$0xff]
      %v1488 = vld [vmem:[#allocation3 + $0x118] sm:$0xff]
      %v1489 = vld [vmem:[#allocation3 + $0x120] sm:$0xff]
      %v1490 = vld [vmem:[#allocation3 + $0x128] sm:$0xff]
      %v1491 = vld [vmem:[#allocation3 + $0x130] sm:$0xff]
      %v1492 = vld [vmem:[#allocation3 + $0x138] sm:$0xff]
      %v1493 = vld [vmem:[#allocation3 + $0x140] sm:$0xff]
      %v1494 = vld [vmem:[#allocation3 + $0x148] sm:$0xff]
      %v1495 = vld [vmem:[#allocation3 + $0x150] sm:$0xff]
      %v1496 = vld [vmem:[#allocation3 + $0x158] sm:$0xff]
      %v1497 = vld [vmem:[#allocation3 + $0x160] sm:$0xff]
      %v1498 = vld [vmem:[#allocation3 + $0x168] sm:$0xff]
      %v1499 = vld [vmem:[#allocation3 + $0x170] sm:$0xff]
      %v1500 = vld [vmem:[#allocation3 + $0x178] sm:$0xff]
      %v1501 = vld [vmem:[#allocation3 + $0x180] sm:$0xff]
      %v1502 = vld [vmem:[#allocation3 + $0x188] sm:$0xff]
      %v1503 = vld [vmem:[#allocation3 + $0x190] sm:$0xff]
      %v1504 = vld [vmem:[#allocation3 + $0x198] sm:$0xff]
      %v1505 = vld [vmem:[#allocation3 + $0x1a0] sm:$0xff]
      %v1506 = vld [vmem:[#allocation3 + $0x1a8] sm:$0xff]
      %v1507 = vld [vmem:[#allocation3 + $0x1b0] sm:$0xff]
      %v1508 = vld [vmem:[#allocation3 + $0x1b8] sm:$0xff]
      %v1509 = vld [vmem:[#allocation3 + $0x1c0] sm:$0xff]
      %v1510 = vld [vmem:[#allocation3 + $0x1c8] sm:$0xff]
      %v1511 = vld [vmem:[#allocation3 + $0x1d0] sm:$0xff]
      %v1512 = vld [vmem:[#allocation3 + $0x1d8] sm:$0xff]
      %v1513 = vld [vmem:[#allocation3 + $0x1e0] sm:$0xff]
      %v1514 = vld [vmem:[#allocation3 + $0x1e8] sm:$0xff]
      %v1515 = vld [vmem:[#allocation3 + $0x1f0] sm:$0xff]
      %v1516 = vld [vmem:[#allocation3 + $0x1f8] sm:$0xff]
      %v1517 = vld [vmem:[#allocation3 + $0x200] sm:$0xff]
      %v1518 = vld [vmem:[#allocation3 + $0x208] sm:$0xff]
      %v1519 = vld [vmem:[#allocation3 + $0x210] sm:$0xff]
      %v1520 = vld [vmem:[#allocation3 + $0x218] sm:$0xff]
      %v1521 = vld [vmem:[#allocation3 + $0x220] sm:$0xff]
      %v1522 = vld [vmem:[#allocation3 + $0x228] sm:$0xff]
      %v1523 = vld [vmem:[#allocation3 + $0x230] sm:$0xff]
      %v1524 = vld [vmem:[#allocation3 + $0x238] sm:$0xff]
      %v1525 = vld [vmem:[#allocation3 + $0x240] sm:$0xff]
      %v1526 = vld [vmem:[#allocation3 + $0x248] sm:$0xff]
      %v1527 = vld [vmem:[#allocation3 + $0x250] sm:$0xff]
      %v1528 = vld [vmem:[#allocation3 + $0x258] sm:$0xff]
      %v1529 = vld [vmem:[#allocation3 + $0x260] sm:$0xff]
      %v1530 = vld [vmem:[#allocation3 + $0x268] sm:$0xff]
      %v1531 = vld [vmem:[#allocation3 + $0x270] sm:$0xff]
      %v1532 = vld [vmem:[#allocation3 + $0x278] sm:$0xff]
      %v1533 = vld [vmem:[#allocation3 + $0x280] sm:$0xff]
      %v1534 = vld [vmem:[#allocation3 + $0x288] sm:$0xff]
      %v1535 = vld [vmem:[#allocation3 + $0x290] sm:$0xff]
      %v1536 = vld [vmem:[#allocation3 + $0x298] sm:$0xff]
      %v1537 = vld [vmem:[#allocation3 + $0x2a0] sm:$0xff]
      %v1538 = vld [vmem:[#allocation3 + $0x2a8] sm:$0xff]
      %v1539 = vld [vmem:[#allocation3 + $0x2b0] sm:$0xff]
      %v1540 = vld [vmem:[#allocation3 + $0x2b8] sm:$0xff]
      %v1541 = vld [vmem:[#allocation3 + $0x2c0] sm:$0xff]
      %v1542 = vld [vmem:[#allocation3 + $0x2c8] sm:$0xff]
      %v1543 = vld [vmem:[#allocation3 + $0x2d0] sm:$0xff]
      %v1544 = vld [vmem:[#allocation3 + $0x2d8] sm:$0xff]
      %v1545 = vld [vmem:[#allocation3 + $0x2e0] sm:$0xff]
      %v1546 = vld [vmem:[#allocation3 + $0x2e8] sm:$0xff]
      %v1547 = vld [vmem:[#allocation3 + $0x2f0] sm:$0xff]
      %v1548 = vld [vmem:[#allocation3 + $0x2f8] sm:$0xff]
      %v1549 = vld [vmem:[#allocation3 + $0x300] sm:$0xff]
      %v1550 = vld [vmem:[#allocation3 + $0x308] sm:$0xff]
      %v1551 = vld [vmem:[#allocation3 + $0x310] sm:$0xff]
      %v1552 = vld [vmem:[#allocation3 + $0x318] sm:$0xff]
      %v1553 = vld [vmem:[#allocation3 + $0x320] sm:$0xff]
      %v1554 = vld [vmem:[#allocation3 + $0x328] sm:$0xff]
      %v1555 = vld [vmem:[#allocation3 + $0x330] sm:$0xff]
      %v1556 = vld [vmem:[#allocation3 + $0x338] sm:$0xff]
      %v1557 = vld [vmem:[#allocation3 + $0x340] sm:$0xff]
      %v1558 = vld [vmem:[#allocation3 + $0x348] sm:$0xff]
      %v1559 = vld [vmem:[#allocation3 + $0x350] sm:$0xff]
      %v1560 = vld [vmem:[#allocation3 + $0x358] sm:$0xff]
      %v1561 = vld [vmem:[#allocation3 + $0x360] sm:$0xff]
      %v1562 = vld [vmem:[#allocation3 + $0x368] sm:$0xff]
      %v1563 = vld [vmem:[#allocation3 + $0x370] sm:$0xff]
      %v1564 = vld [vmem:[#allocation3 + $0x378] sm:$0xff]
      %v1565 = vld [vmem:[#allocation3 + $0x380] sm:$0xff]
      %v1566 = vld [vmem:[#allocation3 + $0x388] sm:$0xff]
      %v1567 = vld [vmem:[#allocation3 + $0x390] sm:$0xff]
      %v1568 = vld [vmem:[#allocation3 + $0x398] sm:$0xff]
      %v1569 = vld [vmem:[#allocation3 + $0x3a0] sm:$0xff]
      %v1570 = vld [vmem:[#allocation3 + $0x3a8] sm:$0xff]
      %v1571 = vld [vmem:[#allocation3 + $0x3b0] sm:$0xff]
      %v1572 = vld [vmem:[#allocation3 + $0x3b8] sm:$0xff]
      %v1573 = vld [vmem:[#allocation3 + $0x3c0] sm:$0xff]
      %v1574 = vld [vmem:[#allocation3 + $0x3c8] sm:$0xff]
      %v1575 = vld [vmem:[#allocation3 + $0x3d0] sm:$0xff]
      %v1576 = vld [vmem:[#allocation3 + $0x3d8] sm:$0xff]
      %v1577 = vld [vmem:[#allocation3 + $0x3e0] sm:$0xff]
      %v1578 = vld [vmem:[#allocation3 + $0x3e8] sm:$0xff]
      %v1579 = vld [vmem:[#allocation3 + $0x3f0] sm:$0xff]
      %v1580 = vld [vmem:[#allocation3 + $0x3f8] sm:$0xff]
      %v1581 = vld [vmem:[#allocation3 + $0x400] sm:$0xff]
      %v1582 = vld [vmem:[#allocation3 + $0x408] sm:$0xff]
      %v1583 = vld [vmem:[#allocation3 + $0x410] sm:$0xff]
      %v1584 = vld [vmem:[#allocation3 + $0x418] sm:$0xff]
      %v1585 = vld [vmem:[#allocation3 + $0x420] sm:$0xff]
      %v1586 = vld [vmem:[#allocation3 + $0x428] sm:$0xff]
      %v1587 = vld [vmem:[#allocation3 + $0x430] sm:$0xff]
      %v1588 = vld [vmem:[#allocation3 + $0x438] sm:$0xff]
      %v1589 = vld [vmem:[#allocation3 + $0x440] sm:$0xff]
      %v1590 = vld [vmem:[#allocation3 + $0x448] sm:$0xff]
      %v1591 = vld [vmem:[#allocation3 + $0x450] sm:$0xff]
      %v1592 = vld [vmem:[#allocation3 + $0x458] sm:$0xff]
      %v1593 = vld [vmem:[#allocation3 + $0x460] sm:$0xff]
      %v1594 = vld [vmem:[#allocation3 + $0x468] sm:$0xff]
      %v1595 = vld [vmem:[#allocation3 + $0x470] sm:$0xff]
      %v1596 = vld [vmem:[#allocation3 + $0x478] sm:$0xff]
      %v1597 = vld [vmem:[#allocation3 + $0x480] sm:$0xff]
      %v1598 = vld [vmem:[#allocation3 + $0x488] sm:$0xff]
      %v1599 = vld [vmem:[#allocation3 + $0x490] sm:$0xff]
      %v1600 = vld [vmem:[#allocation3 + $0x498] sm:$0xff]
      %v1601 = vld [vmem:[#allocation3 + $0x4a0] sm:$0xff]
      %v1602 = vld [vmem:[#allocation3 + $0x4a8] sm:$0xff]
      %v1603 = vld [vmem:[#allocation3 + $0x4b0] sm:$0xff]
      %v1604 = vld [vmem:[#allocation3 + $0x4b8] sm:$0xff]
      %v1605 = vld [vmem:[#allocation3 + $0x4c0] sm:$0xff]
      %v1606 = vld [vmem:[#allocation3 + $0x4c8] sm:$0xff]
      %v1607 = vld [vmem:[#allocation3 + $0x4d0] sm:$0xff]
      %v1608 = vld [vmem:[#allocation3 + $0x4d8] sm:$0xff]
      %v1609 = vld [vmem:[#allocation3 + $0x4e0] sm:$0xff]
      %v1610 = vld [vmem:[#allocation3 + $0x4e8] sm:$0xff]
      %v1611 = vld [vmem:[#allocation3 + $0x4f0] sm:$0xff]
      %v1612 = vld [vmem:[#allocation3 + $0x4f8] sm:$0xff]
      %v1613 = vld [vmem:[#allocation3 + $0x500] sm:$0xff]
      %v1614 = vld [vmem:[#allocation3 + $0x508] sm:$0xff]
      %v1615 = vld [vmem:[#allocation3 + $0x510] sm:$0xff]
      %v1616 = vld [vmem:[#allocation3 + $0x518] sm:$0xff]
      %v1617 = vld [vmem:[#allocation3 + $0x520] sm:$0xff]
      %v1618 = vld [vmem:[#allocation3 + $0x528] sm:$0xff]
      %v1619 = vld [vmem:[#allocation3 + $0x530] sm:$0xff]
      %v1620 = vld [vmem:[#allocation3 + $0x538] sm:$0xff]
      %v1621 = vld [vmem:[#allocation3 + $0x540] sm:$0xff]
      %v1622 = vld [vmem:[#allocation3 + $0x548] sm:$0xff]
      %v1623 = vld [vmem:[#allocation3 + $0x550] sm:$0xff]
      %v1624 = vld [vmem:[#allocation3 + $0x558] sm:$0xff]
      %v1625 = vld [vmem:[#allocation3 + $0x560] sm:$0xff]
      %v1626 = vld [vmem:[#allocation3 + $0x568] sm:$0xff]
      %v1627 = vld [vmem:[#allocation3 + $0x570] sm:$0xff]
      %v1628 = vld [vmem:[#allocation3 + $0x578] sm:$0xff]
      %v1629 = vld [vmem:[#allocation3 + $0x580] sm:$0xff]
      %v1630 = vld [vmem:[#allocation3 + $0x588] sm:$0xff]
      %v1631 = vld [vmem:[#allocation3 + $0x590] sm:$0xff]
      %v1632 = vld [vmem:[#allocation3 + $0x598] sm:$0xff]
      %v1633 = vld [vmem:[#allocation3 + $0x5a0] sm:$0xff]
      %v1634 = vld [vmem:[#allocation3 + $0x5a8] sm:$0xff]
      %v1635 = vld [vmem:[#allocation3 + $0x5b0] sm:$0xff]
      %v1636 = vld [vmem:[#allocation3 + $0x5b8] sm:$0xff]
      %v1637 = vld [vmem:[#allocation3 + $0x5c0] sm:$0xff]
      %v1638 = vld [vmem:[#allocation3 + $0x5c8] sm:$0xff]
      %v1639 = vld [vmem:[#allocation3 + $0x5d0] sm:$0xff]
      %v1640 = vld [vmem:[#allocation3 + $0x5d8] sm:$0xff]
      %v1641 = vld [vmem:[#allocation3 + $0x5e0] sm:$0xff]
      %v1642 = vld [vmem:[#allocation3 + $0x5e8] sm:$0xff]
      %v1643 = vld [vmem:[#allocation3 + $0x5f0] sm:$0xff]
      %v1644 = vld [vmem:[#allocation3 + $0x5f8] sm:$0xff]
      %v1645 = vld [vmem:[#allocation3 + $0x600] sm:$0xff]
      %v1646 = vld [vmem:[#allocation3 + $0x608] sm:$0xff]
      %v1647 = vld [vmem:[#allocation3 + $0x610] sm:$0xff]
      %v1648 = vld [vmem:[#allocation3 + $0x618] sm:$0xff]
      %v1649 = vld [vmem:[#allocation3 + $0x620] sm:$0xff]
      %v1650 = vld [vmem:[#allocation3 + $0x628] sm:$0xff]
      %v1651 = vld [vmem:[#allocation3 + $0x630] sm:$0xff]
      %v1652 = vld [vmem:[#allocation3 + $0x638] sm:$0xff]
      %v1653 = vld [vmem:[#allocation3 + $0x640] sm:$0xff]
      %v1654 = vld [vmem:[#allocation3 + $0x648] sm:$0xff]
      %v1655 = vld [vmem:[#allocation3 + $0x650] sm:$0xff]
      %v1656 = vld [vmem:[#allocation3 + $0x658] sm:$0xff]
      %v1657 = vld [vmem:[#allocation3 + $0x660] sm:$0xff]
      %v1658 = vld [vmem:[#allocation3 + $0x668] sm:$0xff]
      %v1659 = vld [vmem:[#allocation3 + $0x670] sm:$0xff]
      %v1660 = vld [vmem:[#allocation3 + $0x678] sm:$0xff]
      %v1661 = vld [vmem:[#allocation3 + $0x680] sm:$0xff]
      %v1662 = vld [vmem:[#allocation3 + $0x688] sm:$0xff]
      %v1663 = vld [vmem:[#allocation3 + $0x690] sm:$0xff]
      %v1664 = vld [vmem:[#allocation3 + $0x698] sm:$0xff]
      %v1665 = vld [vmem:[#allocation3 + $0x6a0] sm:$0xff]
      %v1666 = vld [vmem:[#allocation3 + $0x6a8] sm:$0xff]
      %v1667 = vld [vmem:[#allocation3 + $0x6b0] sm:$0xff]
      %v1668 = vld [vmem:[#allocation3 + $0x6b8] sm:$0xff]
      %v1669 = vld [vmem:[#allocation3 + $0x6c0] sm:$0xff]
      %v1670 = vld [vmem:[#allocation3 + $0x6c8] sm:$0xff]
      %v1671 = vld [vmem:[#allocation3 + $0x6d0] sm:$0xff]
      %v1672 = vld [vmem:[#allocation3 + $0x6d8] sm:$0xff]
      %v1673 = vld [vmem:[#allocation3 + $0x6e0] sm:$0xff]
      %v1674 = vld [vmem:[#allocation3 + $0x6e8] sm:$0xff]
      %v1675 = vld [vmem:[#allocation3 + $0x6f0] sm:$0xff]
      %v1676 = vld [vmem:[#allocation3 + $0x6f8] sm:$0xff]
      %v1677 = vld [vmem:[#allocation3 + $0x700] sm:$0xff]
      %v1678 = vld [vmem:[#allocation3 + $0x708] sm:$0xff]
      %v1679 = vld [vmem:[#allocation3 + $0x710] sm:$0xff]
      %v1680 = vld [vmem:[#allocation3 + $0x718] sm:$0xff]
      %v1681 = vld [vmem:[#allocation3 + $0x720] sm:$0xff]
      %v1682 = vld [vmem:[#allocation3 + $0x728] sm:$0xff]
      %v1683 = vld [vmem:[#allocation3 + $0x730] sm:$0xff]
      %v1684 = vld [vmem:[#allocation3 + $0x738] sm:$0xff]
      %v1685 = vld [vmem:[#allocation3 + $0x740] sm:$0xff]
      %v1686 = vld [vmem:[#allocation3 + $0x748] sm:$0xff]
      %v1687 = vld [vmem:[#allocation3 + $0x750] sm:$0xff]
      %v1688 = vld [vmem:[#allocation3 + $0x758] sm:$0xff]
      %v1689 = vld [vmem:[#allocation3 + $0x760] sm:$0xff]
      %v1690 = vld [vmem:[#allocation3 + $0x768] sm:$0xff]
      %v1691 = vld [vmem:[#allocation3 + $0x770] sm:$0xff]
      %v1692 = vld [vmem:[#allocation3 + $0x778] sm:$0xff]
      %v1693 = vld [vmem:[#allocation3 + $0x780] sm:$0xff]
      %v1694 = vld [vmem:[#allocation3 + $0x788] sm:$0xff]
      %v1695 = vld [vmem:[#allocation3 + $0x790] sm:$0xff]
      %v1696 = vld [vmem:[#allocation3 + $0x798] sm:$0xff]
      %v1697 = vld [vmem:[#allocation3 + $0x7a0] sm:$0xff]
      %v1698 = vld [vmem:[#allocation3 + $0x7a8] sm:$0xff]
      %v1699 = vld [vmem:[#allocation3 + $0x7b0] sm:$0xff]
      %v1700 = vld [vmem:[#allocation3 + $0x7b8] sm:$0xff]
      %v1701 = vld [vmem:[#allocation3 + $0x7c0] sm:$0xff]
      %v1702 = vld [vmem:[#allocation3 + $0x7c8] sm:$0xff]
      %v1703 = vld [vmem:[#allocation3 + $0x7d0] sm:$0xff]
      %v1704 = vld [vmem:[#allocation3 + $0x7d8] sm:$0xff]
      %v1705 = vld [vmem:[#allocation3 + $0x7e0] sm:$0xff]
      %v1706 = vld [vmem:[#allocation3 + $0x7e8] sm:$0xff]
      %v1707 = vld [vmem:[#allocation3 + $0x7f0] sm:$0xff]
      %v1708 = vld [vmem:[#allocation3 + $0x7f8] sm:$0xff]
      %v1709 = vld [vmem:[%s2] sm:$0xff]
      %v1711 = vlaneseq
      %v1712 = vshrl.u32 %v1711, 7
      %v1713 = vsub.s32 0, %v1712
      %v1714 = vrot.slane %v1709, %v1713
      %v1715 = vlaneseq
      %v1716 = vshrl.u32 %v1715, 7
      %v1717 = vsub.s32 1, %v1716
      %v1718 = vrot.slane %v1709, %v1717
      %v1719 = vlaneseq
      %v1720 = vshrl.u32 %v1719, 7
      %v1721 = vsub.s32 2, %v1720
      %v1722 = vrot.slane %v1709, %v1721
      %v1723 = vlaneseq
      %v1724 = vshrl.u32 %v1723, 7
      %v1725 = vsub.s32 3, %v1724
      %v1726 = vrot.slane %v1709, %v1725
      %v1727 = vlaneseq
      %v1728 = vshrl.u32 %v1727, 7
      %v1729 = vsub.s32 4, %v1728
      %v1730 = vrot.slane %v1709, %v1729
      %v1731 = vlaneseq
      %v1732 = vshrl.u32 %v1731, 7
      %v1733 = vsub.s32 5, %v1732
      %v1734 = vrot.slane %v1709, %v1733
      %v1735 = vlaneseq
      %v1736 = vshrl.u32 %v1735, 7
      %v1737 = vsub.s32 6, %v1736
      %v1738 = vrot.slane %v1709, %v1737
      %v1739 = vlaneseq
      %v1740 = vshrl.u32 %v1739, 7
      %v1741 = vsub.s32 7, %v1740
      %v1742 = vrot.slane %v1709, %v1741
      %1751 = vmatprep.subr.mxu0 %v1574
      %1752 = vmatpush1.msra.mxu0 %v1573
      %1753 = vmatprep.subr.mxu0 %v1566
      %1754 = vmatpush1.msra.mxu0 %v1565
      %1755 = vmatprep.subr.mxu0 %v1558
      %1756 = vmatpush1.msra.mxu0 %v1557
      %1757 = vmatprep.subr.mxu0 %v1550
      %1758 = vmatpush1.msra.mxu0 %v1549
      %1759 = vmatprep.subr.mxu0 %v1542
      %1760 = vmatpush1.msra.mxu0 %v1541
      %1761 = vmatprep.subr.mxu0 %v1534
      %1762 = vmatpush1.msra.mxu0 %v1533
      %1763 = vmatprep.subr.mxu0 %v1526
      %1764 = vmatpush1.msra.mxu0 %v1525
      %1765 = vmatprep.subr.mxu0 %v1518
      %1766 = vmatpush1.msra.mxu0 %v1517
      %1767 = vmatprep.subr.mxu0 %v1510
      %1768 = vmatpush1.msra.mxu0 %v1509
      %1769 = vmatprep.subr.mxu0 %v1502
      %1770 = vmatpush1.msra.mxu0 %v1501
      %1771 = vmatprep.subr.mxu0 %v1494
      %1772 = vmatpush1.msra.mxu0 %v1493
      %1773 = vmatprep.subr.mxu0 %v1486
      %1774 = vmatpush1.msra.mxu0 %v1485
      %1775 = vmatprep.subr.mxu0 %v1478
      %1776 = vmatpush1.msra.mxu0 %v1477
      %1777 = vmatprep.subr.mxu0 %v1470
      %1778 = vmatpush1.msra.mxu0 %v1469
      %1779 = vmatprep.subr.mxu0 %v1462
      %1780 = vmatpush1.msra.mxu0 %v1461
      %1781 = vmatprep.subr.mxu0 %v1454
      %1782 = vmatpush1.msra.mxu0 %v1453
      %1783 = vmatprep.subr.mxu0 %v1702
      %1784 = vmatpush2.msra.mxu0 %v1701
      %1785 = vmatprep.subr.mxu0 %v1694
      %1786 = vmatpush2.msra.mxu0 %v1693
      %1787 = vmatprep.subr.mxu0 %v1686
      %1788 = vmatpush2.msra.mxu0 %v1685
      %1789 = vmatprep.subr.mxu0 %v1678
      %1790 = vmatpush2.msra.mxu0 %v1677
      %1791 = vmatprep.subr.mxu0 %v1670
      %1792 = vmatpush2.msra.mxu0 %v1669
      %1793 = vmatprep.subr.mxu0 %v1662
      %1794 = vmatpush2.msra.mxu0 %v1661
      %1795 = vmatprep.subr.mxu0 %v1654
      %1796 = vmatpush2.msra.mxu0 %v1653
      %1797 = vmatprep.subr.mxu0 %v1646
      %1798 = vmatpush2.msra.mxu0 %v1645
      %1799 = vmatprep.subr.mxu0 %v1638
      %1800 = vmatpush2.msra.mxu0 %v1637
      %1801 = vmatprep.subr.mxu0 %v1630
      %1802 = vmatpush2.msra.mxu0 %v1629
      %1803 = vmatprep.subr.mxu0 %v1622
      %1804 = vmatpush2.msra.mxu0 %v1621
      %1805 = vmatprep.subr.mxu0 %v1614
      %1806 = vmatpush2.msra.mxu0 %v1613
      %1807 = vmatprep.subr.mxu0 %v1606
      %1808 = vmatpush2.msra.mxu0 %v1605
      %1809 = vmatprep.subr.mxu0 %v1598
      %1810 = vmatpush2.msra.mxu0 %v1597
      %1811 = vmatprep.subr.mxu0 %v1590
      %1812 = vmatpush2.msra.mxu0 %v1589
      %1813 = vmatprep.subr.mxu0 %v1582
      %1814 = vmatpush2.msra.mxu0 %v1581
      %1815 = vmatprep.mubr.f32.mxu0 %v1450
      %1816 = vmatmul.mubr.f32.gmra.mxu0 %v1449
      %v1817 = vpop.f32.mrf.mxu0
      %v1818 = vadd.f32 %v1714, %v1817
      %v1819 = vpop.f32.mrf.mxu0
      %v1820 = vadd.f32 %v1718, %v1819
      %1821 = vmatprep.mubr.f32.mxu0 %v1452
      %1822 = vmatmul.mubr.f32.gmra.mxu0 %v1451
      %v1823 = vpop.f32.mrf.mxu0
      %v1824 = vadd.f32 %v1714, %v1823
      %v1825 = vpop.f32.mrf.mxu0
      %v1826 = vadd.f32 %v1718, %v1825
      %1827 = vdwg.mxu0
      %1828 = vmatprep.subr.mxu0 %v1576
      %1829 = vmatpush1.msra.mxu0 %v1575
      %1830 = vmatprep.subr.mxu0 %v1568
      %1831 = vmatpush1.msra.mxu0 %v1567
      %1832 = vmatprep.subr.mxu0 %v1560
      %1833 = vmatpush1.msra.mxu0 %v1559
      %1834 = vmatprep.subr.mxu0 %v1552
      %1835 = vmatpush1.msra.mxu0 %v1551
      %1836 = vmatprep.subr.mxu0 %v1544
      %1837 = vmatpush1.msra.mxu0 %v1543
      %1838 = vmatprep.subr.mxu0 %v1536
      %1839 = vmatpush1.msra.mxu0 %v1535
      %1840 = vmatprep.subr.mxu0 %v1528
      %1841 = vmatpush1.msra.mxu0 %v1527
      %1842 = vmatprep.subr.mxu0 %v1520
      %1843 = vmatpush1.msra.mxu0 %v1519
      %1844 = vmatprep.subr.mxu0 %v1512
      %1845 = vmatpush1.msra.mxu0 %v1511
      %1846 = vmatprep.subr.mxu0 %v1504
      %1847 = vmatpush1.msra.mxu0 %v1503
      %1848 = vmatprep.subr.mxu0 %v1496
      %1849 = vmatpush1.msra.mxu0 %v1495
      %1850 = vmatprep.subr.mxu0 %v1488
      %1851 = vmatpush1.msra.mxu0 %v1487
      %1852 = vmatprep.subr.mxu0 %v1480
      %1853 = vmatpush1.msra.mxu0 %v1479
      %1854 = vmatprep.subr.mxu0 %v1472
      %1855 = vmatpush1.msra.mxu0 %v1471
      %1856 = vmatprep.subr.mxu0 %v1464
      %1857 = vmatpush1.msra.mxu0 %v1463
      %1858 = vmatprep.subr.mxu0 %v1456
      %1859 = vmatpush1.msra.mxu0 %v1455
      %1860 = vmatprep.subr.mxu0 %v1704
      %1861 = vmatpush2.msra.mxu0 %v1703
      %1862 = vmatprep.subr.mxu0 %v1696
      %1863 = vmatpush2.msra.mxu0 %v1695
      %1864 = vmatprep.subr.mxu0 %v1688
      %1865 = vmatpush2.msra.mxu0 %v1687
      %1866 = vmatprep.subr.mxu0 %v1680
      %1867 = vmatpush2.msra.mxu0 %v1679
      %1868 = vmatprep.subr.mxu0 %v1672
      %1869 = vmatpush2.msra.mxu0 %v1671
      %1870 = vmatprep.subr.mxu0 %v1664
      %1871 = vmatpush2.msra.mxu0 %v1663
      %1872 = vmatprep.subr.mxu0 %v1656
      %1873 = vmatpush2.msra.mxu0 %v1655
      %1874 = vmatprep.subr.mxu0 %v1648
      %1875 = vmatpush2.msra.mxu0 %v1647
      %1876 = vmatprep.subr.mxu0 %v1640
      %1877 = vmatpush2.msra.mxu0 %v1639
      %1878 = vmatprep.subr.mxu0 %v1632
      %1879 = vmatpush2.msra.mxu0 %v1631
      %1880 = vmatprep.subr.mxu0 %v1624
      %1881 = vmatpush2.msra.mxu0 %v1623
      %1882 = vmatprep.subr.mxu0 %v1616
      %1883 = vmatpush2.msra.mxu0 %v1615
      %1884 = vmatprep.subr.mxu0 %v1608
      %1885 = vmatpush2.msra.mxu0 %v1607
      %1886 = vmatprep.subr.mxu0 %v1600
      %1887 = vmatpush2.msra.mxu0 %v1599
      %1888 = vmatprep.subr.mxu0 %v1592
      %1889 = vmatpush2.msra.mxu0 %v1591
      %1890 = vmatprep.subr.mxu0 %v1584
      %1891 = vmatpush2.msra.mxu0 %v1583
      %1892 = vmatprep.mubr.f32.mxu0 %v1450
      %1893 = vmatmul.mubr.f32.gmra.mxu0 %v1449
      %v1894 = vpop.f32.mrf.mxu0
      %v1895 = vadd.f32 %v1722, %v1894
      %v1896 = vpop.f32.mrf.mxu0
      %v1897 = vadd.f32 %v1726, %v1896
      %1898 = vmatprep.mubr.f32.mxu0 %v1452
      %1899 = vmatmul.mubr.f32.gmra.mxu0 %v1451
      %v1900 = vpop.f32.mrf.mxu0
      %v1901 = vadd.f32 %v1722, %v1900
      %v1902 = vpop.f32.mrf.mxu0
      %v1903 = vadd.f32 %v1726, %v1902
      %1904 = vdwg.mxu0
      %1905 = vmatprep.subr.mxu0 %v1578
      %1906 = vmatpush1.msra.mxu0 %v1577
      %1907 = vmatprep.subr.mxu0 %v1570
      %1908 = vmatpush1.msra.mxu0 %v1569
      %1909 = vmatprep.subr.mxu0 %v1562
      %1910 = vmatpush1.msra.mxu0 %v1561
      %1911 = vmatprep.subr.mxu0 %v1554
      %1912 = vmatpush1.msra.mxu0 %v1553
      %1913 = vmatprep.subr.mxu0 %v1546
      %1914 = vmatpush1.msra.mxu0 %v1545
      %1915 = vmatprep.subr.mxu0 %v1538
      %1916 = vmatpush1.msra.mxu0 %v1537
      %1917 = vmatprep.subr.mxu0 %v1530
      %1918 = vmatpush1.msra.mxu0 %v1529
      %1919 = vmatprep.subr.mxu0 %v1522
      %1920 = vmatpush1.msra.mxu0 %v1521
      %1921 = vmatprep.subr.mxu0 %v1514
      %1922 = vmatpush1.msra.mxu0 %v1513
      %1923 = vmatprep.subr.mxu0 %v1506
      %1924 = vmatpush1.msra.mxu0 %v1505
      %1925 = vmatprep.subr.mxu0 %v1498
      %1926 = vmatpush1.msra.mxu0 %v1497
      %1927 = vmatprep.subr.mxu0 %v1490
      %1928 = vmatpush1.msra.mxu0 %v1489
      %1929 = vmatprep.subr.mxu0 %v1482
      %1930 = vmatpush1.msra.mxu0 %v1481
      %1931 = vmatprep.subr.mxu0 %v1474
      %1932 = vmatpush1.msra.mxu0 %v1473
      %1933 = vmatprep.subr.mxu0 %v1466
      %1934 = vmatpush1.msra.mxu0 %v1465
      %1935 = vmatprep.subr.mxu0 %v1458
      %1936 = vmatpush1.msra.mxu0 %v1457
      %1937 = vmatprep.subr.mxu0 %v1706
      %1938 = vmatpush2.msra.mxu0 %v1705
      %1939 = vmatprep.subr.mxu0 %v1698
      %1940 = vmatpush2.msra.mxu0 %v1697
      %1941 = vmatprep.subr.mxu0 %v1690
      %1942 = vmatpush2.msra.mxu0 %v1689
      %1943 = vmatprep.subr.mxu0 %v1682
      %1944 = vmatpush2.msra.mxu0 %v1681
      %1945 = vmatprep.subr.mxu0 %v1674
      %1946 = vmatpush2.msra.mxu0 %v1673
      %1947 = vmatprep.subr.mxu0 %v1666
      %1948 = vmatpush2.msra.mxu0 %v1665
      %1949 = vmatprep.subr.mxu0 %v1658
      %1950 = vmatpush2.msra.mxu0 %v1657
      %1951 = vmatprep.subr.mxu0 %v1650
      %1952 = vmatpush2.msra.mxu0 %v1649
      %1953 = vmatprep.subr.mxu0 %v1642
      %1954 = vmatpush2.msra.mxu0 %v1641
      %1955 = vmatprep.subr.mxu0 %v1634
      %1956 = vmatpush2.msra.mxu0 %v1633
      %1957 = vmatprep.subr.mxu0 %v1626
      %1958 = vmatpush2.msra.mxu0 %v1625
      %1959 = vmatprep.subr.mxu0 %v1618
      %1960 = vmatpush2.msra.mxu0 %v1617
      %1961 = vmatprep.subr.mxu0 %v1610
      %1962 = vmatpush2.msra.mxu0 %v1609
      %1963 = vmatprep.subr.mxu0 %v1602
      %1964 = vmatpush2.msra.mxu0 %v1601
      %1965 = vmatprep.subr.mxu0 %v1594
      %1966 = vmatpush2.msra.mxu0 %v1593
      %1967 = vmatprep.subr.mxu0 %v1586
      %1968 = vmatpush2.msra.mxu0 %v1585
      %1969 = vmatprep.mubr.f32.mxu0 %v1450
      %1970 = vmatmul.mubr.f32.gmra.mxu0 %v1449
      %v1971 = vpop.f32.mrf.mxu0
      %v1972 = vadd.f32 %v1730, %v1971
      %v1973 = vpop.f32.mrf.mxu0
      %v1974 = vadd.f32 %v1734, %v1973
      %1975 = vmatprep.mubr.f32.mxu0 %v1452
      %1976 = vmatmul.mubr.f32.gmra.mxu0 %v1451
      %v1977 = vpop.f32.mrf.mxu0
      %v1978 = vadd.f32 %v1730, %v1977
      %v1979 = vpop.f32.mrf.mxu0
      %v1980 = vadd.f32 %v1734, %v1979
      %1981 = vdwg.mxu0
      %1982 = vmatprep.subr.mxu0 %v1580
      %1983 = vmatpush1.msra.mxu0 %v1579
      %1984 = vmatprep.subr.mxu0 %v1572
      %1985 = vmatpush1.msra.mxu0 %v1571
      %1986 = vmatprep.subr.mxu0 %v1564
      %1987 = vmatpush1.msra.mxu0 %v1563
      %1988 = vmatprep.subr.mxu0 %v1556
      %1989 = vmatpush1.msra.mxu0 %v1555
      %1990 = vmatprep.subr.mxu0 %v1548
      %1991 = vmatpush1.msra.mxu0 %v1547
      %1992 = vmatprep.subr.mxu0 %v1540
      %1993 = vmatpush1.msra.mxu0 %v1539
      %1994 = vmatprep.subr.mxu0 %v1532
      %1995 = vmatpush1.msra.mxu0 %v1531
      %1996 = vmatprep.subr.mxu0 %v1524
      %1997 = vmatpush1.msra.mxu0 %v1523
      %1998 = vmatprep.subr.mxu0 %v1516
      %1999 = vmatpush1.msra.mxu0 %v1515
      %2000 = vmatprep.subr.mxu0 %v1508
      %2001 = vmatpush1.msra.mxu0 %v1507
      %2002 = vmatprep.subr.mxu0 %v1500
      %2003 = vmatpush1.msra.mxu0 %v1499
      %2004 = vmatprep.subr.mxu0 %v1492
      %2005 = vmatpush1.msra.mxu0 %v1491
      %2006 = vmatprep.subr.mxu0 %v1484
      %2007 = vmatpush1.msra.mxu0 %v1483
      %2008 = vmatprep.subr.mxu0 %v1476
      %2009 = vmatpush1.msra.mxu0 %v1475
      %2010 = vmatprep.subr.mxu0 %v1468
      %2011 = vmatpush1.msra.mxu0 %v1467
      %2012 = vmatprep.subr.mxu0 %v1460
      %2013 = vmatpush1.msra.mxu0 %v1459
      %2014 = vmatprep.subr.mxu0 %v1708
      %2015 = vmatpush2.msra.mxu0 %v1707
      %2016 = vmatprep.subr.mxu0 %v1700
      %2017 = vmatpush2.msra.mxu0 %v1699
      %2018 = vmatprep.subr.mxu0 %v1692
      %2019 = vmatpush2.msra.mxu0 %v1691
      %2020 = vmatprep.subr.mxu0 %v1684
      %2021 = vmatpush2.msra.mxu0 %v1683
      %2022 = vmatprep.subr.mxu0 %v1676
      %2023 = vmatpush2.msra.mxu0 %v1675
      %2024 = vmatprep.subr.mxu0 %v1668
      %2025 = vmatpush2.msra.mxu0 %v1667
      %2026 = vmatprep.subr.mxu0 %v1660
      %2027 = vmatpush2.msra.mxu0 %v1659
      %2028 = vmatprep.subr.mxu0 %v1652
      %2029 = vmatpush2.msra.mxu0 %v1651
      %2030 = vmatprep.subr.mxu0 %v1644
      %2031 = vmatpush2.msra.mxu0 %v1643
      %2032 = vmatprep.subr.mxu0 %v1636
      %2033 = vmatpush2.msra.mxu0 %v1635
      %2034 = vmatprep.subr.mxu0 %v1628
      %2035 = vmatpush2.msra.mxu0 %v1627
      %2036 = vmatprep.subr.mxu0 %v1620
      %2037 = vmatpush2.msra.mxu0 %v1619
      %2038 = vmatprep.subr.mxu0 %v1612
      %2039 = vmatpush2.msra.mxu0 %v1611
      %2040 = vmatprep.subr.mxu0 %v1604
      %2041 = vmatpush2.msra.mxu0 %v1603
      %2042 = vmatprep.subr.mxu0 %v1596
      %2043 = vmatpush2.msra.mxu0 %v1595
      %2044 = vmatprep.subr.mxu0 %v1588
      %2045 = vmatpush2.msra.mxu0 %v1587
      %2046 = vmatprep.mubr.f32.mxu0 %v1450
      %2047 = vmatmul.mubr.f32.gmra.mxu0 %v1449
      %v2048 = vpop.f32.mrf.mxu0
      %v2049 = vadd.f32 %v1738, %v2048
      %v2050 = vpop.f32.mrf.mxu0
      %v2051 = vadd.f32 %v1742, %v2050
      %2052 = vmatprep.mubr.f32.mxu0 %v1452
      %2053 = vmatmul.mubr.f32.gmra.mxu0 %v1451
      %v2054 = vpop.f32.mrf.mxu0
      %v2055 = vadd.f32 %v1738, %v2054
      %v2056 = vpop.f32.mrf.mxu0
      %v2057 = vadd.f32 %v1742, %v2056
      %2058 = vdwg.mxu0
      %vm2059 = vcmp.gt.f32.partialorder %v1818, 0.0
      %vm2060 = vcmp.gt.f32.partialorder %v1820, 0.0
      %vm2061 = vcmp.gt.f32.partialorder %v1895, 0.0
      %vm2062 = vcmp.gt.f32.partialorder %v1897, 0.0
      %vm2063 = vcmp.gt.f32.partialorder %v1972, 0.0
      %vm2064 = vcmp.gt.f32.partialorder %v1974, 0.0
      %vm2065 = vcmp.gt.f32.partialorder %v2049, 0.0
      %vm2066 = vcmp.gt.f32.partialorder %v2051, 0.0
      %vm2067 = vcmp.gt.f32.partialorder %v1824, 0.0
      %vm2068 = vcmp.gt.f32.partialorder %v1826, 0.0
      %vm2069 = vcmp.gt.f32.partialorder %v1901, 0.0
      %vm2070 = vcmp.gt.f32.partialorder %v1903, 0.0
      %vm2071 = vcmp.gt.f32.partialorder %v1978, 0.0
      %vm2072 = vcmp.gt.f32.partialorder %v1980, 0.0
      %vm2073 = vcmp.gt.f32.partialorder %v2055, 0.0
      %vm2074 = vcmp.gt.f32.partialorder %v2057, 0.0
      %v2075 = vmin.f32 %v1818, 0.0
      %v2076 = vmin.f32 %v1820, 0.0
      %v2077 = vmin.f32 %v1895, 0.0
      %v2078 = vmin.f32 %v1897, 0.0
      %v2079 = vmin.f32 %v1972, 0.0
      %v2080 = vmin.f32 %v1974, 0.0
      %v2081 = vmin.f32 %v2049, 0.0
      %v2082 = vmin.f32 %v2051, 0.0
      %v2083 = vmin.f32 %v1824, 0.0
      %v2084 = vmin.f32 %v1826, 0.0
      %v2085 = vmin.f32 %v1901, 0.0
      %v2086 = vmin.f32 %v1903, 0.0
      %v2087 = vmin.f32 %v1978, 0.0
      %v2088 = vmin.f32 %v1980, 0.0
      %v2089 = vmin.f32 %v2055, 0.0
      %v2090 = vmin.f32 %v2057, 0.0
      %v2091 = vmul.f32 %v2075, 1.442695
      %v2092 = vpow.pop %v2091
      %v2093 = vmul.f32 %v2076, 1.442695
      %v2094 = vpow.pop %v2093
      %v2095 = vmul.f32 %v2077, 1.442695
      %v2096 = vpow.pop %v2095
      %v2097 = vmul.f32 %v2078, 1.442695
      %v2098 = vpow.pop %v2097
      %v2099 = vmul.f32 %v2079, 1.442695
      %v2100 = vpow.pop %v2099
      %v2101 = vmul.f32 %v2080, 1.442695
      %v2102 = vpow.pop %v2101
      %v2103 = vmul.f32 %v2081, 1.442695
      %v2104 = vpow.pop %v2103
      %v2105 = vmul.f32 %v2082, 1.442695
      %v2106 = vpow.pop %v2105
      %v2107 = vmul.f32 %v2083, 1.442695
      %v2108 = vpow.pop %v2107
      %v2109 = vmul.f32 %v2084, 1.442695
      %v2110 = vpow.pop %v2109
      %v2111 = vmul.f32 %v2085, 1.442695
      %v2112 = vpow.pop %v2111
      %v2113 = vmul.f32 %v2086, 1.442695
      %v2114 = vpow.pop %v2113
      %v2115 = vmul.f32 %v2087, 1.442695
      %v2116 = vpow.pop %v2115
      %v2117 = vmul.f32 %v2088, 1.442695
      %v2118 = vpow.pop %v2117
      %v2119 = vmul.f32 %v2089, 1.442695
      %v2120 = vpow.pop %v2119
      %v2121 = vmul.f32 %v2090, 1.442695
      %v2122 = vpow.pop %v2121
      %v2123 = vsub.f32 %v2092, 1.0
      %v2124 = vsub.f32 %v2094, 1.0
      %v2125 = vsub.f32 %v2096, 1.0
      %v2126 = vsub.f32 %v2098, 1.0
      %v2127 = vsub.f32 %v2100, 1.0
      %v2128 = vsub.f32 %v2102, 1.0
      %v2129 = vsub.f32 %v2104, 1.0
      %v2130 = vsub.f32 %v2106, 1.0
      %v2131 = vsub.f32 %v2108, 1.0
      %v2132 = vsub.f32 %v2110, 1.0
      %v2133 = vsub.f32 %v2112, 1.0
      %v2134 = vsub.f32 %v2114, 1.0
      %v2135 = vsub.f32 %v2116, 1.0
      %v2136 = vsub.f32 %v2118, 1.0
      %v2137 = vsub.f32 %v2120, 1.0
      %v2138 = vsub.f32 %v2122, 1.0
      %v2139 = vsel %vm2059, %v1818, %v2123
      %v2140 = vsel %vm2060, %v1820, %v2124
      %v2141 = vsel %vm2061, %v1895, %v2125
      %v2142 = vsel %vm2062, %v1897, %v2126
      %v2143 = vsel %vm2063, %v1972, %v2127
      %v2144 = vsel %vm2064, %v1974, %v2128
      %v2145 = vsel %vm2065, %v2049, %v2129
      %v2146 = vsel %vm2066, %v2051, %v2130
      %v2147 = vsel %vm2067, %v1824, %v2131
      %v2148 = vsel %vm2068, %v1826, %v2132
      %v2149 = vsel %vm2069, %v1901, %v2133
      %v2150 = vsel %vm2070, %v1903, %v2134
      %v2151 = vsel %vm2071, %v1978, %v2135
      %v2152 = vsel %vm2072, %v1980, %v2136
      %v2153 = vsel %vm2073, %v2055, %v2137
      %v2154 = vsel %vm2074, %v2057, %v2138
      %v2155 = vld [vmem:[%s3] sm:$0xff]
      %v2156 = vld [vmem:[%s3 + $0x8] sm:$0xff]
      %v2157 = vld [vmem:[%s3 + $0x10] sm:$0xff]
      %v2158 = vld [vmem:[%s3 + $0x18] sm:$0xff]
      %v2159 = vld [vmem:[%s3 + $0x20] sm:$0xff]
      %v2160 = vld [vmem:[%s3 + $0x28] sm:$0xff]
      %v2161 = vld [vmem:[%s3 + $0x30] sm:$0xff]
      %v2162 = vld [vmem:[%s3 + $0x38] sm:$0xff]
      %v2163 = vld [vmem:[%s3 + $0x40] sm:$0xff]
      %v2164 = vld [vmem:[%s3 + $0x48] sm:$0xff]
      %v2165 = vld [vmem:[%s3 + $0x50] sm:$0xff]
      %v2166 = vld [vmem:[%s3 + $0x58] sm:$0xff]
      %v2167 = vld [vmem:[%s3 + $0x60] sm:$0xff]
      %v2168 = vld [vmem:[%s3 + $0x68] sm:$0xff]
      %v2169 = vld [vmem:[%s3 + $0x70] sm:$0xff]
      %v2170 = vld [vmem:[%s3 + $0x78] sm:$0xff]
      %v2171 = vld [vmem:[%s3 + $0x80] sm:$0xff]
      %v2172 = vld [vmem:[%s3 + $0x88] sm:$0xff]
      %v2173 = vld [vmem:[%s3 + $0x90] sm:$0xff]
      %v2174 = vld [vmem:[%s3 + $0x98] sm:$0xff]
      %v2175 = vld [vmem:[%s3 + $0xa0] sm:$0xff]
      %v2176 = vld [vmem:[%s3 + $0xa8] sm:$0xff]
      %v2177 = vld [vmem:[%s3 + $0xb0] sm:$0xff]
      %v2178 = vld [vmem:[%s3 + $0xb8] sm:$0xff]
      %v2179 = vld [vmem:[%s3 + $0xc0] sm:$0xff]
      %v2180 = vld [vmem:[%s3 + $0xc8] sm:$0xff]
      %v2181 = vld [vmem:[%s3 + $0xd0] sm:$0xff]
      %v2182 = vld [vmem:[%s3 + $0xd8] sm:$0xff]
      %v2183 = vld [vmem:[%s3 + $0xe0] sm:$0xff]
      %v2184 = vld [vmem:[%s3 + $0xe8] sm:$0xff]
      %v2185 = vld [vmem:[%s3 + $0xf0] sm:$0xff]
      %v2186 = vld [vmem:[%s3 + $0xf8] sm:$0xff]
      %v2187 = vld [vmem:[%s3 + $0x100] sm:$0xff]
      %v2188 = vld [vmem:[%s3 + $0x108] sm:$0xff]
      %v2189 = vld [vmem:[%s3 + $0x110] sm:$0xff]
      %v2190 = vld [vmem:[%s3 + $0x118] sm:$0xff]
      %v2191 = vld [vmem:[%s3 + $0x120] sm:$0xff]
      %v2192 = vld [vmem:[%s3 + $0x128] sm:$0xff]
      %v2193 = vld [vmem:[%s3 + $0x130] sm:$0xff]
      %v2194 = vld [vmem:[%s3 + $0x138] sm:$0xff]
      %v2195 = vld [vmem:[%s3 + $0x140] sm:$0xff]
      %v2196 = vld [vmem:[%s3 + $0x148] sm:$0xff]
      %v2197 = vld [vmem:[%s3 + $0x150] sm:$0xff]
      %v2198 = vld [vmem:[%s3 + $0x158] sm:$0xff]
      %v2199 = vld [vmem:[%s3 + $0x160] sm:$0xff]
      %v2200 = vld [vmem:[%s3 + $0x168] sm:$0xff]
      %v2201 = vld [vmem:[%s3 + $0x170] sm:$0xff]
      %v2202 = vld [vmem:[%s3 + $0x178] sm:$0xff]
      %v2203 = vld [vmem:[%s3 + $0x180] sm:$0xff]
      %v2204 = vld [vmem:[%s3 + $0x188] sm:$0xff]
      %v2205 = vld [vmem:[%s3 + $0x190] sm:$0xff]
      %v2206 = vld [vmem:[%s3 + $0x198] sm:$0xff]
      %v2207 = vld [vmem:[%s3 + $0x1a0] sm:$0xff]
      %v2208 = vld [vmem:[%s3 + $0x1a8] sm:$0xff]
      %v2209 = vld [vmem:[%s3 + $0x1b0] sm:$0xff]
      %v2210 = vld [vmem:[%s3 + $0x1b8] sm:$0xff]
      %v2211 = vld [vmem:[%s3 + $0x1c0] sm:$0xff]
      %v2212 = vld [vmem:[%s3 + $0x1c8] sm:$0xff]
      %v2213 = vld [vmem:[%s3 + $0x1d0] sm:$0xff]
      %v2214 = vld [vmem:[%s3 + $0x1d8] sm:$0xff]
      %v2215 = vld [vmem:[%s3 + $0x1e0] sm:$0xff]
      %v2216 = vld [vmem:[%s3 + $0x1e8] sm:$0xff]
      %v2217 = vld [vmem:[%s3 + $0x1f0] sm:$0xff]
      %v2218 = vld [vmem:[%s3 + $0x1f8] sm:$0xff]
      %v2219 = vld [vmem:[%s3 + $0x200] sm:$0xff]
      %v2220 = vld [vmem:[%s3 + $0x208] sm:$0xff]
      %v2221 = vld [vmem:[%s3 + $0x210] sm:$0xff]
      %v2222 = vld [vmem:[%s3 + $0x218] sm:$0xff]
      %v2223 = vld [vmem:[%s3 + $0x220] sm:$0xff]
      %v2224 = vld [vmem:[%s3 + $0x228] sm:$0xff]
      %v2225 = vld [vmem:[%s3 + $0x230] sm:$0xff]
      %v2226 = vld [vmem:[%s3 + $0x238] sm:$0xff]
      %v2227 = vld [vmem:[%s3 + $0x240] sm:$0xff]
      %v2228 = vld [vmem:[%s3 + $0x248] sm:$0xff]
      %v2229 = vld [vmem:[%s3 + $0x250] sm:$0xff]
      %v2230 = vld [vmem:[%s3 + $0x258] sm:$0xff]
      %v2231 = vld [vmem:[%s3 + $0x260] sm:$0xff]
      %v2232 = vld [vmem:[%s3 + $0x268] sm:$0xff]
      %v2233 = vld [vmem:[%s3 + $0x270] sm:$0xff]
      %v2234 = vld [vmem:[%s3 + $0x278] sm:$0xff]
      %v2235 = vld [vmem:[%s3 + $0x280] sm:$0xff]
      %v2236 = vld [vmem:[%s3 + $0x288] sm:$0xff]
      %v2237 = vld [vmem:[%s3 + $0x290] sm:$0xff]
      %v2238 = vld [vmem:[%s3 + $0x298] sm:$0xff]
      %v2239 = vld [vmem:[%s3 + $0x2a0] sm:$0xff]
      %v2240 = vld [vmem:[%s3 + $0x2a8] sm:$0xff]
      %v2241 = vld [vmem:[%s3 + $0x2b0] sm:$0xff]
      %v2242 = vld [vmem:[%s3 + $0x2b8] sm:$0xff]
      %v2243 = vld [vmem:[%s3 + $0x2c0] sm:$0xff]
      %v2244 = vld [vmem:[%s3 + $0x2c8] sm:$0xff]
      %v2245 = vld [vmem:[%s3 + $0x2d0] sm:$0xff]
      %v2246 = vld [vmem:[%s3 + $0x2d8] sm:$0xff]
      %v2247 = vld [vmem:[%s3 + $0x2e0] sm:$0xff]
      %v2248 = vld [vmem:[%s3 + $0x2e8] sm:$0xff]
      %v2249 = vld [vmem:[%s3 + $0x2f0] sm:$0xff]
      %v2250 = vld [vmem:[%s3 + $0x2f8] sm:$0xff]
      %v2251 = vld [vmem:[%s3 + $0x300] sm:$0xff]
      %v2252 = vld [vmem:[%s3 + $0x308] sm:$0xff]
      %v2253 = vld [vmem:[%s3 + $0x310] sm:$0xff]
      %v2254 = vld [vmem:[%s3 + $0x318] sm:$0xff]
      %v2255 = vld [vmem:[%s3 + $0x320] sm:$0xff]
      %v2256 = vld [vmem:[%s3 + $0x328] sm:$0xff]
      %v2257 = vld [vmem:[%s3 + $0x330] sm:$0xff]
      %v2258 = vld [vmem:[%s3 + $0x338] sm:$0xff]
      %v2259 = vld [vmem:[%s3 + $0x340] sm:$0xff]
      %v2260 = vld [vmem:[%s3 + $0x348] sm:$0xff]
      %v2261 = vld [vmem:[%s3 + $0x350] sm:$0xff]
      %v2262 = vld [vmem:[%s3 + $0x358] sm:$0xff]
      %v2263 = vld [vmem:[%s3 + $0x360] sm:$0xff]
      %v2264 = vld [vmem:[%s3 + $0x368] sm:$0xff]
      %v2265 = vld [vmem:[%s3 + $0x370] sm:$0xff]
      %v2266 = vld [vmem:[%s3 + $0x378] sm:$0xff]
      %v2267 = vld [vmem:[%s3 + $0x380] sm:$0xff]
      %v2268 = vld [vmem:[%s3 + $0x388] sm:$0xff]
      %v2269 = vld [vmem:[%s3 + $0x390] sm:$0xff]
      %v2270 = vld [vmem:[%s3 + $0x398] sm:$0xff]
      %v2271 = vld [vmem:[%s3 + $0x3a0] sm:$0xff]
      %v2272 = vld [vmem:[%s3 + $0x3a8] sm:$0xff]
      %v2273 = vld [vmem:[%s3 + $0x3b0] sm:$0xff]
      %v2274 = vld [vmem:[%s3 + $0x3b8] sm:$0xff]
      %v2275 = vld [vmem:[%s3 + $0x3c0] sm:$0xff]
      %v2276 = vld [vmem:[%s3 + $0x3c8] sm:$0xff]
      %v2277 = vld [vmem:[%s3 + $0x3d0] sm:$0xff]
      %v2278 = vld [vmem:[%s3 + $0x3d8] sm:$0xff]
      %v2279 = vld [vmem:[%s3 + $0x3e0] sm:$0xff]
      %v2280 = vld [vmem:[%s3 + $0x3e8] sm:$0xff]
      %v2281 = vld [vmem:[%s3 + $0x3f0] sm:$0xff]
      %v2282 = vld [vmem:[%s3 + $0x3f8] sm:$0xff]
      %v2283 = vld [vmem:[%s4] sm:$0x1]
      %v2285 = vlaneseq
      %v2286 = vshrl.u32 %v2285, 7
      %v2287 = vsub.s32 0, %v2286
      %v2288 = vrot.slane %v2283, %v2287
      %2290 = vmatprep.subr.mxu0 0.0
      %2291 = vmatpush1.msra.mxu0 %v2170
      %2292 = vmatprep.subr.mxu0 0.0
      %2293 = vmatpush1.msra.mxu0 %v2169
      %2294 = vmatprep.subr.mxu0 0.0
      %2295 = vmatpush1.msra.mxu0 %v2168
      %2296 = vmatprep.subr.mxu0 0.0
      %2297 = vmatpush1.msra.mxu0 %v2167
      %2298 = vmatprep.subr.mxu0 0.0
      %2299 = vmatpush1.msra.mxu0 %v2166
      %2300 = vmatprep.subr.mxu0 0.0
      %2301 = vmatpush1.msra.mxu0 %v2165
      %2302 = vmatprep.subr.mxu0 0.0
      %2303 = vmatpush1.msra.mxu0 %v2164
      %2304 = vmatprep.subr.mxu0 0.0
      %2305 = vmatpush1.msra.mxu0 %v2163
      %2306 = vmatprep.subr.mxu0 0.0
      %2307 = vmatpush1.msra.mxu0 %v2162
      %2308 = vmatprep.subr.mxu0 0.0
      %2309 = vmatpush1.msra.mxu0 %v2161
      %2310 = vmatprep.subr.mxu0 0.0
      %2311 = vmatpush1.msra.mxu0 %v2160
      %2312 = vmatprep.subr.mxu0 0.0
      %2313 = vmatpush1.msra.mxu0 %v2159
      %2314 = vmatprep.subr.mxu0 0.0
      %2315 = vmatpush1.msra.mxu0 %v2158
      %2316 = vmatprep.subr.mxu0 0.0
      %2317 = vmatpush1.msra.mxu0 %v2157
      %2318 = vmatprep.subr.mxu0 0.0
      %2319 = vmatpush1.msra.mxu0 %v2156
      %2320 = vmatprep.subr.mxu0 0.0
      %2321 = vmatpush1.msra.mxu0 %v2155
      %2322 = vmatprep.subr.mxu0 0.0
      %2323 = vmatpush2.msra.mxu0 %v2186
      %2324 = vmatprep.subr.mxu0 0.0
      %2325 = vmatpush2.msra.mxu0 %v2185
      %2326 = vmatprep.subr.mxu0 0.0
      %2327 = vmatpush2.msra.mxu0 %v2184
      %2328 = vmatprep.subr.mxu0 0.0
      %2329 = vmatpush2.msra.mxu0 %v2183
      %2330 = vmatprep.subr.mxu0 0.0
      %2331 = vmatpush2.msra.mxu0 %v2182
      %2332 = vmatprep.subr.mxu0 0.0
      %2333 = vmatpush2.msra.mxu0 %v2181
      %2334 = vmatprep.subr.mxu0 0.0
      %2335 = vmatpush2.msra.mxu0 %v2180
      %2336 = vmatprep.subr.mxu0 0.0
      %2337 = vmatpush2.msra.mxu0 %v2179
      %2338 = vmatprep.subr.mxu0 0.0
      %2339 = vmatpush2.msra.mxu0 %v2178
      %2340 = vmatprep.subr.mxu0 0.0
      %2341 = vmatpush2.msra.mxu0 %v2177
      %2342 = vmatprep.subr.mxu0 0.0
      %2343 = vmatpush2.msra.mxu0 %v2176
      %2344 = vmatprep.subr.mxu0 0.0
      %2345 = vmatpush2.msra.mxu0 %v2175
      %2346 = vmatprep.subr.mxu0 0.0
      %2347 = vmatpush2.msra.mxu0 %v2174
      %2348 = vmatprep.subr.mxu0 0.0
      %2349 = vmatpush2.msra.mxu0 %v2173
      %2350 = vmatprep.subr.mxu0 0.0
      %2351 = vmatpush2.msra.mxu0 %v2172
      %2352 = vmatprep.subr.mxu0 0.0
      %2353 = vmatpush2.msra.mxu0 %v2171
      %2354 = vmatprep.mubr.f32.mxu0 %v2140
      %2355 = vmatmul.mubr.f32.gmra.mxu0 %v2139
      %v2356 = vpop.f32.mrf.mxu0
      %v2357 = vadd.f32 %v2288, %v2356
      %v2358 = vpop.f32.mrf.mxu0
      %2359 = vmatprep.mubr.f32.mxu0 %v2148
      %2360 = vmatmul.mubr.f32.gmra.mxu0 %v2147
      %v2361 = vpop.f32.mrf.mxu0
      %v2362 = vadd.f32 %v2288, %v2361
      %v2363 = vpop.f32.mrf.mxu0
      %2364 = vdwg.mxu0
      %2365 = vmatprep.subr.mxu0 0.0
      %2366 = vmatpush1.msra.mxu0 %v2202
      %2367 = vmatprep.subr.mxu0 0.0
      %2368 = vmatpush1.msra.mxu0 %v2201
      %2369 = vmatprep.subr.mxu0 0.0
      %2370 = vmatpush1.msra.mxu0 %v2200
      %2371 = vmatprep.subr.mxu0 0.0
      %2372 = vmatpush1.msra.mxu0 %v2199
      %2373 = vmatprep.subr.mxu0 0.0
      %2374 = vmatpush1.msra.mxu0 %v2198
      %2375 = vmatprep.subr.mxu0 0.0
      %2376 = vmatpush1.msra.mxu0 %v2197
      %2377 = vmatprep.subr.mxu0 0.0
      %2378 = vmatpush1.msra.mxu0 %v2196
      %2379 = vmatprep.subr.mxu0 0.0
      %2380 = vmatpush1.msra.mxu0 %v2195
      %2381 = vmatprep.subr.mxu0 0.0
      %2382 = vmatpush1.msra.mxu0 %v2194
      %2383 = vmatprep.subr.mxu0 0.0
      %2384 = vmatpush1.msra.mxu0 %v2193
      %2385 = vmatprep.subr.mxu0 0.0
      %2386 = vmatpush1.msra.mxu0 %v2192
      %2387 = vmatprep.subr.mxu0 0.0
      %2388 = vmatpush1.msra.mxu0 %v2191
      %2389 = vmatprep.subr.mxu0 0.0
      %2390 = vmatpush1.msra.mxu0 %v2190
      %2391 = vmatprep.subr.mxu0 0.0
      %2392 = vmatpush1.msra.mxu0 %v2189
      %2393 = vmatprep.subr.mxu0 0.0
      %2394 = vmatpush1.msra.mxu0 %v2188
      %2395 = vmatprep.subr.mxu0 0.0
      %2396 = vmatpush1.msra.mxu0 %v2187
      %2397 = vmatprep.subr.mxu0 0.0
      %2398 = vmatpush2.msra.mxu0 %v2218
      %2399 = vmatprep.subr.mxu0 0.0
      %2400 = vmatpush2.msra.mxu0 %v2217
      %2401 = vmatprep.subr.mxu0 0.0
      %2402 = vmatpush2.msra.mxu0 %v2216
      %2403 = vmatprep.subr.mxu0 0.0
      %2404 = vmatpush2.msra.mxu0 %v2215
      %2405 = vmatprep.subr.mxu0 0.0
      %2406 = vmatpush2.msra.mxu0 %v2214
      %2407 = vmatprep.subr.mxu0 0.0
      %2408 = vmatpush2.msra.mxu0 %v2213
      %2409 = vmatprep.subr.mxu0 0.0
      %2410 = vmatpush2.msra.mxu0 %v2212
      %2411 = vmatprep.subr.mxu0 0.0
      %2412 = vmatpush2.msra.mxu0 %v2211
      %2413 = vmatprep.subr.mxu0 0.0
      %2414 = vmatpush2.msra.mxu0 %v2210
      %2415 = vmatprep.subr.mxu0 0.0
      %2416 = vmatpush2.msra.mxu0 %v2209
      %2417 = vmatprep.subr.mxu0 0.0
      %2418 = vmatpush2.msra.mxu0 %v2208
      %2419 = vmatprep.subr.mxu0 0.0
      %2420 = vmatpush2.msra.mxu0 %v2207
      %2421 = vmatprep.subr.mxu0 0.0
      %2422 = vmatpush2.msra.mxu0 %v2206
      %2423 = vmatprep.subr.mxu0 0.0
      %2424 = vmatpush2.msra.mxu0 %v2205
      %2425 = vmatprep.subr.mxu0 0.0
      %2426 = vmatpush2.msra.mxu0 %v2204
      %2427 = vmatprep.subr.mxu0 0.0
      %2428 = vmatpush2.msra.mxu0 %v2203
      %2429 = vmatprep.mubr.f32.mxu0 %v2142
      %2430 = vmatmul.mubr.f32.gmra.mxu0 %v2141
      %v2431 = vpop.f32.mrf.mxu0
      %v2432 = vadd.f32 %v2357, %v2431
      %v2433 = vpop.f32.mrf.mxu0
      %2434 = vmatprep.mubr.f32.mxu0 %v2150
      %2435 = vmatmul.mubr.f32.gmra.mxu0 %v2149
      %v2436 = vpop.f32.mrf.mxu0
      %v2437 = vadd.f32 %v2362, %v2436
      %v2438 = vpop.f32.mrf.mxu0
      %2439 = vdwg.mxu0
      %2440 = vmatprep.subr.mxu0 0.0
      %2441 = vmatpush1.msra.mxu0 %v2234
      %2442 = vmatprep.subr.mxu0 0.0
      %2443 = vmatpush1.msra.mxu0 %v2233
      %2444 = vmatprep.subr.mxu0 0.0
      %2445 = vmatpush1.msra.mxu0 %v2232
      %2446 = vmatprep.subr.mxu0 0.0
      %2447 = vmatpush1.msra.mxu0 %v2231
      %2448 = vmatprep.subr.mxu0 0.0
      %2449 = vmatpush1.msra.mxu0 %v2230
      %2450 = vmatprep.subr.mxu0 0.0
      %2451 = vmatpush1.msra.mxu0 %v2229
      %2452 = vmatprep.subr.mxu0 0.0
      %2453 = vmatpush1.msra.mxu0 %v2228
      %2454 = vmatprep.subr.mxu0 0.0
      %2455 = vmatpush1.msra.mxu0 %v2227
      %2456 = vmatprep.subr.mxu0 0.0
      %2457 = vmatpush1.msra.mxu0 %v2226
      %2458 = vmatprep.subr.mxu0 0.0
      %2459 = vmatpush1.msra.mxu0 %v2225
      %2460 = vmatprep.subr.mxu0 0.0
      %2461 = vmatpush1.msra.mxu0 %v2224
      %2462 = vmatprep.subr.mxu0 0.0
      %2463 = vmatpush1.msra.mxu0 %v2223
      %2464 = vmatprep.subr.mxu0 0.0
      %2465 = vmatpush1.msra.mxu0 %v2222
      %2466 = vmatprep.subr.mxu0 0.0
      %2467 = vmatpush1.msra.mxu0 %v2221
      %2468 = vmatprep.subr.mxu0 0.0
      %2469 = vmatpush1.msra.mxu0 %v2220
      %2470 = vmatprep.subr.mxu0 0.0
      %2471 = vmatpush1.msra.mxu0 %v2219
      %2472 = vmatprep.subr.mxu0 0.0
      %2473 = vmatpush2.msra.mxu0 %v2250
      %2474 = vmatprep.subr.mxu0 0.0
      %2475 = vmatpush2.msra.mxu0 %v2249
      %2476 = vmatprep.subr.mxu0 0.0
      %2477 = vmatpush2.msra.mxu0 %v2248
      %2478 = vmatprep.subr.mxu0 0.0
      %2479 = vmatpush2.msra.mxu0 %v2247
      %2480 = vmatprep.subr.mxu0 0.0
      %2481 = vmatpush2.msra.mxu0 %v2246
      %2482 = vmatprep.subr.mxu0 0.0
      %2483 = vmatpush2.msra.mxu0 %v2245
      %2484 = vmatprep.subr.mxu0 0.0
      %2485 = vmatpush2.msra.mxu0 %v2244
      %2486 = vmatprep.subr.mxu0 0.0
      %2487 = vmatpush2.msra.mxu0 %v2243
      %2488 = vmatprep.subr.mxu0 0.0
      %2489 = vmatpush2.msra.mxu0 %v2242
      %2490 = vmatprep.subr.mxu0 0.0
      %2491 = vmatpush2.msra.mxu0 %v2241
      %2492 = vmatprep.subr.mxu0 0.0
      %2493 = vmatpush2.msra.mxu0 %v2240
      %2494 = vmatprep.subr.mxu0 0.0
      %2495 = vmatpush2.msra.mxu0 %v2239
      %2496 = vmatprep.subr.mxu0 0.0
      %2497 = vmatpush2.msra.mxu0 %v2238
      %2498 = vmatprep.subr.mxu0 0.0
      %2499 = vmatpush2.msra.mxu0 %v2237
      %2500 = vmatprep.subr.mxu0 0.0
      %2501 = vmatpush2.msra.mxu0 %v2236
      %2502 = vmatprep.subr.mxu0 0.0
      %2503 = vmatpush2.msra.mxu0 %v2235
      %2504 = vmatprep.mubr.f32.mxu0 %v2144
      %2505 = vmatmul.mubr.f32.gmra.mxu0 %v2143
      %v2506 = vpop.f32.mrf.mxu0
      %v2507 = vadd.f32 %v2432, %v2506
      %v2508 = vpop.f32.mrf.mxu0
      %2509 = vmatprep.mubr.f32.mxu0 %v2152
      %2510 = vmatmul.mubr.f32.gmra.mxu0 %v2151
      %v2511 = vpop.f32.mrf.mxu0
      %v2512 = vadd.f32 %v2437, %v2511
      %v2513 = vpop.f32.mrf.mxu0
      %2514 = vdwg.mxu0
      %2515 = vmatprep.subr.mxu0 0.0
      %2516 = vmatpush1.msra.mxu0 %v2266
      %2517 = vmatprep.subr.mxu0 0.0
      %2518 = vmatpush1.msra.mxu0 %v2265
      %2519 = vmatprep.subr.mxu0 0.0
      %2520 = vmatpush1.msra.mxu0 %v2264
      %2521 = vmatprep.subr.mxu0 0.0
      %2522 = vmatpush1.msra.mxu0 %v2263
      %2523 = vmatprep.subr.mxu0 0.0
      %2524 = vmatpush1.msra.mxu0 %v2262
      %2525 = vmatprep.subr.mxu0 0.0
      %2526 = vmatpush1.msra.mxu0 %v2261
      %2527 = vmatprep.subr.mxu0 0.0
      %2528 = vmatpush1.msra.mxu0 %v2260
      %2529 = vmatprep.subr.mxu0 0.0
      %2530 = vmatpush1.msra.mxu0 %v2259
      %2531 = vmatprep.subr.mxu0 0.0
      %2532 = vmatpush1.msra.mxu0 %v2258
      %2533 = vmatprep.subr.mxu0 0.0
      %2534 = vmatpush1.msra.mxu0 %v2257
      %2535 = vmatprep.subr.mxu0 0.0
      %2536 = vmatpush1.msra.mxu0 %v2256
      %2537 = vmatprep.subr.mxu0 0.0
      %2538 = vmatpush1.msra.mxu0 %v2255
      %2539 = vmatprep.subr.mxu0 0.0
      %2540 = vmatpush1.msra.mxu0 %v2254
      %2541 = vmatprep.subr.mxu0 0.0
      %2542 = vmatpush1.msra.mxu0 %v2253
      %2543 = vmatprep.subr.mxu0 0.0
      %2544 = vmatpush1.msra.mxu0 %v2252
      %2545 = vmatprep.subr.mxu0 0.0
      %2546 = vmatpush1.msra.mxu0 %v2251
      %2547 = vmatprep.subr.mxu0 0.0
      %2548 = vmatpush2.msra.mxu0 %v2282
      %2549 = vmatprep.subr.mxu0 0.0
      %2550 = vmatpush2.msra.mxu0 %v2281
      %2551 = vmatprep.subr.mxu0 0.0
      %2552 = vmatpush2.msra.mxu0 %v2280
      %2553 = vmatprep.subr.mxu0 0.0
      %2554 = vmatpush2.msra.mxu0 %v2279
      %2555 = vmatprep.subr.mxu0 0.0
      %2556 = vmatpush2.msra.mxu0 %v2278
      %2557 = vmatprep.subr.mxu0 0.0
      %2558 = vmatpush2.msra.mxu0 %v2277
      %2559 = vmatprep.subr.mxu0 0.0
      %2560 = vmatpush2.msra.mxu0 %v2276
      %2561 = vmatprep.subr.mxu0 0.0
      %2562 = vmatpush2.msra.mxu0 %v2275
      %2563 = vmatprep.subr.mxu0 0.0
      %2564 = vmatpush2.msra.mxu0 %v2274
      %2565 = vmatprep.subr.mxu0 0.0
      %2566 = vmatpush2.msra.mxu0 %v2273
      %2567 = vmatprep.subr.mxu0 0.0
      %2568 = vmatpush2.msra.mxu0 %v2272
      %2569 = vmatprep.subr.mxu0 0.0
      %2570 = vmatpush2.msra.mxu0 %v2271
      %2571 = vmatprep.subr.mxu0 0.0
      %2572 = vmatpush2.msra.mxu0 %v2270
      %2573 = vmatprep.subr.mxu0 0.0
      %2574 = vmatpush2.msra.mxu0 %v2269
      %2575 = vmatprep.subr.mxu0 0.0
      %2576 = vmatpush2.msra.mxu0 %v2268
      %2577 = vmatprep.subr.mxu0 0.0
      %2578 = vmatpush2.msra.mxu0 %v2267
      %2579 = vmatprep.mubr.f32.mxu0 %v2146
      %2580 = vmatmul.mubr.f32.gmra.mxu0 %v2145
      %v2581 = vpop.f32.mrf.mxu0
      %v2582 = vadd.f32 %v2507, %v2581
      %v2583 = vpop.f32.mrf.mxu0
      %2584 = vmatprep.mubr.f32.mxu0 %v2154
      %2585 = vmatmul.mubr.f32.gmra.mxu0 %v2153
      %v2586 = vpop.f32.mrf.mxu0
      %v2587 = vadd.f32 %v2512, %v2586
      %v2588 = vpop.f32.mrf.mxu0
      %2589 = vdwg.mxu0
      %vm2590 = vcmask 326656
      %v2591 = vsel %vm2590, %v2582, -inf
      %2592 = vmax.xlane.f32.xlu0 %v2591
      %v2593 = vpop.xlane.xlu0 %2592
      %v2594 = vsel %vm2590, %v2587, -inf
      %2595 = vmax.xlane.f32.xlu0 %v2594
      %v2596 = vpop.xlane.xlu0 %2595
      %v2597 = vsub.f32 %v2582, %v2593
      %v2598 = vsub.f32 %v2587, %v2596
      %v2599 = vmul.f32 %v2597, 1.442695
      %v2600 = vpow.pop %v2599
      %v2601 = vmul.f32 %v2598, 1.442695
      %v2602 = vpow.pop %v2601
      %v2603 = vsel %vm2590, %v2600, 0.0
      %2604 = vadd.xlane.f32.xlu0 %v2603
      %v2605 = vpop.xlane.xlu0 %2604
      %v2606 = vsel %vm2590, %v2602, 0.0
      %2607 = vadd.xlane.f32.xlu0 %v2606
      %v2608 = vpop.xlane.xlu0 %2607
      %v2609 = vlog2.pop %v2605
      %v2610 = vmul.f32 %v2609, 0.6931472
      %v2611 = vlog2.pop %v2608
      %v2612 = vmul.f32 %v2611, 0.6931472
      %v2613 = vsub.f32 %v2597, %v2610
      %v2614 = vsub.f32 %v2598, %v2612
      %2615 = vst.msk [vmem:[#allocation6] sm:$0xff] %vm2590, %v2613
      %2616 = vst.msk [vmem:[#allocation6 + $0x8] sm:$0xff] %vm2590, %v2614
    $region33: #{net_head_pallas.1} parent=1 // pred_fallthru
      _
    // Predicated region
    $region34: #{net_head_pallas.1} parent=1 // pred_check
      _
    $region35: #{net_head_pallas.1} parent=1 // pred_check_branch
      %2618 = sbr.rel (0) target = $region37
    $region36: #{net_head_pallas.1} parent=1 // pred_region
      %s2620 = ssub.s32 256, 256
      %2621 = vsyncadd [#allocation5], %s2620
      %s2622 = sshll.u32 [#allocation6], 4
      %s2623 = int_to_ptr.vmem [resolvable:$true] %s2622
      %2628 = dma.vmem_to_hbm [thread:$0]  %s2623, 256, %s5, [#allocation5], 128, 128, 8
    $region37: #{net_head_pallas.1} parent=1 // pred_fallthru
      _
    // Predicated region
    $region38: #{net_head_pallas.1} parent=1 // pred_check
      _
    $region39: #{net_head_pallas.1} parent=1 // pred_check_branch
      %2630 = sbr.rel (0) target = $region41
    $region40: #{net_head_pallas.1} parent=1 // pred_region
      %2631 = dma.done [#allocation5], 256
    $region41: #{net_head_pallas.1} parent=1 // pred_fallthru
      _
    %2632 = vsyncpa [#allocation4], 1
    %2633 = vsyncpa [#allocation5], 1

</llo_original>
